<compile_context>
chip_gen: v5e
topology: v5e:2x2
jax: 0.10.0
libtpu: 0.0.40
codegen_flags: <defaults>
</compile_context>

<pallas_src>
import functools

import jax
import jax.numpy as jnp
import numpy as np
from jax import lax
from jax.experimental import pallas as pl
from jax.experimental.pallas import tpu as pltpu


_PAD = 128  # lane-aligned zero halo used when building the conv taps


def _group_norm_silu_cf(x, a_ref, gamma, beta, inv_n, eps):
    """GroupNorm (biased var, matches torch.nn.GroupNorm) + SiLU, channels-first.

    x: (C, HW) f32; a_ref: resident (C, C) same-group indicator; gamma/beta (C, 1).
    Reduce over HW first (lane reduction), then group-sum via the tiny matmul.
    """
    ch_sum = jnp.sum(x, axis=-1, keepdims=True)                       # (C, 1)
    mean_c = jnp.dot(a_ref[...], ch_sum,
                     preferred_element_type=jnp.float32) * inv_n      # (C, 1)
    xc = x - mean_c
    sq_sum = jnp.sum(xc * xc, axis=-1, keepdims=True)                 # (C, 1)
    var_c = jnp.dot(a_ref[...], sq_sum,
                    preferred_element_type=jnp.float32) * inv_n       # (C, 1)
    y = xc * lax.rsqrt(var_c + eps) * gamma + beta
    return y * jax.nn.sigmoid(y)                                      # SiLU


def _conv3x3_cf(h, w_ref, b_ref, masks_ref, W, HW):
    """3x3 'same' conv as 9 per-tap accumulating bf16 matmuls, channels-first.

    h: (C, HW) f32; w_ref: resident (9, Cout, C) bf16 (tap-major, dy-major order);
    b_ref: (Cout, 1) f32; masks_ref: resident (9, HW) f32 tap-validity masks.
    """
    C = h.shape[0]
    Cout = w_ref.shape[1]
    zeros = jnp.zeros((C, _PAD), jnp.float32)
    win = jnp.concatenate([zeros, h, zeros], axis=-1)    # aligned zero halo
    acc = jnp.zeros((Cout, HW), jnp.float32)
    k = 0
    for dy in (-1, 0, 1):
        for dx in (-1, 0, 1):
            s = dy * W + dx
            if s == 0:
                tap = h                                   # center tap: always valid
            else:
                tap = win[:, _PAD + s:_PAD + s + HW]      # lane-shifted view
                tap = tap * masks_ref[k:k + 1, :]         # zero invalid borders
            acc = acc + jnp.dot(w_ref[k], tap.astype(jnp.bfloat16),
                                preferred_element_type=jnp.float32)
            k += 1
    return acc + b_ref[...]


def resnet_block_kernel(x_ref, tproj_ref, masks_ref, a1_ref, a2_ref,
                        g1_ref, b1_ref, w1_ref, c1b_ref,
                        g2_ref, b2_ref, w2_ref, c2b_ref,
                        *rest,
                        W, HW, inv_n1, inv_n2, eps, out_scale, has_shortcut):
    if has_shortcut:
        ws_ref, bs_ref, out_ref = rest
    else:
        (out_ref,) = rest

    x = x_ref[0].astype(jnp.float32)                     # (Cin, HW)

    # norm1 + SiLU -> conv1 (per-tap accumulating matmuls)
    h = _group_norm_silu_cf(x, a1_ref, g1_ref[...], b1_ref[...], inv_n1, eps)
    h = _conv3x3_cf(h, w1_ref, c1b_ref, masks_ref, W, HW)

    # + time embedding (SiLU + Linear precomputed in the wrapper)
    h = h + tproj_ref[0]

    # norm2 + SiLU (dropout p=0 in eval -> identity) -> conv2
    h = _group_norm_silu_cf(h, a2_ref, g2_ref[...], b2_ref[...], inv_n2, eps)
    h = _conv3x3_cf(h, w2_ref, c2b_ref, masks_ref, W, HW)

    # shortcut (1x1 conv when Cin != Cout, identity otherwise) + residual + scale
    if has_shortcut:
        sc = jnp.dot(ws_ref[...], x.astype(jnp.bfloat16),
                     preferred_element_type=jnp.float32) + bs_ref[...]
    else:
        sc = x
    out_ref[0] = ((sc + h) * (1.0 / out_scale)).astype(out_ref.dtype)


def _group_indicator(C, G):
    idx = np.arange(C) // (C // G)
    return jnp.asarray((idx[:, None] == idx[None, :]).astype(np.float32))


def resnet_block_2d(x_nchw, temb, params, *, groups, groups_out=None,
                    eps=1e-6, output_scale_factor=1.0):
    B, Cin, H, W = x_nchw.shape
    HW = H * W
    Cout = params['conv1_w'].shape[-1]
    if groups_out is None:
        groups_out = groups
    has_shortcut = params.get('short_w') is not None
    assert W + 1 <= _PAD, "spatial width too large for the fixed conv halo"

    # Hoisted time-embedding branch: SiLU + Linear, done once per call in JAX.
    t = temb * jax.nn.sigmoid(temb)
    tproj = (t @ params['time_w'] + params['time_b']).reshape(B, Cout, 1)
    tproj = tproj.astype(jnp.float32)

    # Channels-first flat activations (NCHW -> (B, C, HW); keep caller dtype).
    x_flat = x_nchw.reshape(B, Cin, HW)

    # Per-tap conv weights: (9, Cout, Cin) bf16, tap-major (dy-major, dx-minor).
    w1_taps = jnp.transpose(params['conv1_w'], (0, 1, 3, 2)) \
        .reshape(9, Cout, Cin).astype(jnp.bfloat16)
    w2_taps = jnp.transpose(params['conv2_w'], (0, 1, 3, 2)) \
        .reshape(9, Cout, Cout).astype(jnp.bfloat16)
    g1 = params['norm1_g'].reshape(Cin, 1).astype(jnp.float32)
    b1 = params['norm1_b'].reshape(Cin, 1).astype(jnp.float32)
    g2 = params['norm2_g'].reshape(Cout, 1).astype(jnp.float32)
    b2 = params['norm2_b'].reshape(Cout, 1).astype(jnp.float32)
    c1b = params['conv1_b'].reshape(Cout, 1).astype(jnp.float32)
    c2b = params['conv2_b'].reshape(Cout, 1).astype(jnp.float32)

    # Grid-invariant 3x3 tap validity masks, built once (resident (9, HW) f32).
    pos = np.arange(HW)
    xi, yi = pos % W, pos // W
    masks = np.stack([((xi + dx >= 0) & (xi + dx < W) &
                       (yi + dy >= 0) & (yi + dy < H))
                      for dy in (-1, 0, 1) for dx in (-1, 0, 1)])
    masks = jnp.asarray(masks.astype(np.float32))                     # (9, HW)

    # Group-indicator matrices (built once, passed resident).
    A1 = _group_indicator(Cin, groups)
    A2 = _group_indicator(Cout, groups_out)

    inv_n1 = 1.0 / float((Cin // groups) * HW)
    inv_n2 = 1.0 / float((Cout // groups_out) * HW)

    kernel = functools.partial(
        resnet_block_kernel, W=W, HW=HW, inv_n1=inv_n1, inv_n2=inv_n2,
        eps=eps, out_scale=output_scale_factor, has_shortcut=has_shortcut)

    def resident(shape):
        n = len(shape)
        return pl.BlockSpec(shape, lambda b, _n=n: (0,) * _n)

    in_specs = [
        pl.BlockSpec((1, Cin, HW), lambda b: (b, 0, 0)),     # x
        pl.BlockSpec((1, Cout, 1), lambda b: (b, 0, 0)),     # temb projection
        resident((9, HW)),                                   # tap masks
        resident((Cin, Cin)), resident((Cout, Cout)),        # group indicators
        resident((Cin, 1)), resident((Cin, 1)),              # norm1 gamma/beta
        resident((9, Cout, Cin)), resident((Cout, 1)),       # conv1 w/b
        resident((Cout, 1)), resident((Cout, 1)),            # norm2 gamma/beta
        resident((9, Cout, Cout)), resident((Cout, 1)),      # conv2 w/b
    ]
    operands = [x_flat, tproj, masks, A1, A2,
                g1, b1, w1_taps, c1b, g2, b2, w2_taps, c2b]
    if has_shortcut:
        ws = jnp.transpose(params['short_w']).astype(jnp.bfloat16)    # (Cout, Cin)
        bs = params['short_b'].reshape(Cout, 1).astype(jnp.float32)
        in_specs += [resident((Cout, Cin)), resident((Cout, 1))]
        operands += [ws, bs]

    out_flat = pl.pallas_call(
        kernel,
        out_shape=jax.ShapeDtypeStruct((B, Cout, HW), x_nchw.dtype),
        grid_spec=pltpu.PrefetchScalarGridSpec(
            num_scalar_prefetch=0,
            grid=(B,),
            in_specs=in_specs,
            out_specs=pl.BlockSpec((1, Cout, HW), lambda b: (b, 0, 0)),
        ),
        compiler_params=pltpu.CompilerParams(
            dimension_semantics=("parallel",),
            vmem_limit_bytes=48 * 1024 * 1024),
    )(*operands)
    return out_flat.reshape(B, Cout, H, W)


def reference_forward(x, temb, params, groups, groups_out, eps, osf):
    """Pure-JAX reference mirroring the PyTorch module (eval mode, defaults)."""
    def gn(z, g, b, G):
        B, C, H, W = z.shape
        zg = z.reshape(B, G, C // G, H, W)
        m = zg.mean(axis=(2, 3, 4), keepdims=True)
        v = zg.var(axis=(2, 3, 4), keepdims=True)
        zn = ((zg - m) / jnp.sqrt(v + eps)).reshape(B, C, H, W)
        return zn * g.reshape(1, C, 1, 1) + b.reshape(1, C, 1, 1)

    silu = lambda z: z * jax.nn.sigmoid(z)
    conv = lambda z, w: lax.conv_general_dilated(
        z, w, (1, 1), 'SAME', dimension_numbers=('NCHW', 'HWIO', 'NCHW'))

    h = silu(gn(x, params['norm1_g'], params['norm1_b'], groups))
    h = conv(h, params['conv1_w']) + params['conv1_b'].reshape(1, -1, 1, 1)
    t = silu(temb) @ params['time_w'] + params['time_b']
    h = h + t[:, :, None, None]
    h = silu(gn(h, params['norm2_g'], params['norm2_b'], groups_out))
    h = conv(h, params['conv2_w']) + params['conv2_b'].reshape(1, -1, 1, 1)
    if params.get('short_w') is not None:
        Cin, Cout = params['short_w'].shape
        sc = conv(x, params['short_w'].reshape(1, 1, Cin, Cout)) \
            + params['short_b'].reshape(1, -1, 1, 1)
    else:
        sc = x
    return (sc + h) / osf


if __name__ == "__main__":
    # Small-shape config consistent with the module (groups must divide channels).
    B, Cin, Cout, H, W = 2, 8, 16, 16, 16
    Tc = 32                    # temb_channels
    groups = 4
    eps = 1e-6
    osf = 1.0                  # output_scale_factor

    key = jax.random.PRNGKey(0)
    ks = jax.random.split(key, 16)

    params = {
        'norm1_g': 1.0 + 0.1 * jax.random.normal(ks[0], (Cin,), jnp.float32),
        'norm1_b': 0.1 * jax.random.normal(ks[1], (Cin,), jnp.float32),
        'conv1_w': 0.1 * jax.random.normal(ks[2], (3, 3, Cin, Cout), jnp.float32),
        'conv1_b': 0.1 * jax.random.normal(ks[3], (Cout,), jnp.float32),
        'time_w':  0.1 * jax.random.normal(ks[4], (Tc, Cout), jnp.float32),
        'time_b':  0.1 * jax.random.normal(ks[5], (Cout,), jnp.float32),
        'norm2_g': 1.0 + 0.1 * jax.random.normal(ks[6], (Cout,), jnp.float32),
        'norm2_b': 0.1 * jax.random.normal(ks[7], (Cout,), jnp.float32),
        'conv2_w': 0.1 * jax.random.normal(ks[8], (3, 3, Cout, Cout), jnp.float32),
        'conv2_b': 0.1 * jax.random.normal(ks[9], (Cout,), jnp.float32),
        'short_w': 0.1 * jax.random.normal(ks[10], (Cin, Cout), jnp.float32),
        'short_b': 0.1 * jax.random.normal(ks[11], (Cout,), jnp.float32),
    }

    x = jax.random.normal(ks[12], (B, Cin, H, W), jnp.float32)      # NCHW, like PyTorch
    temb = jax.random.normal(ks[13], (B, Tc), jnp.float32)

    out = resnet_block_2d(x, temb, params, groups=groups, eps=eps,
                          output_scale_factor=osf)
    out = jax.block_until_ready(out)

    ref = jax.block_until_ready(
        reference_forward(x, temb, params, groups, groups, eps, osf))
    np.testing.assert_allclose(np.asarray(out), np.asarray(ref),
                               rtol=2e-2, atol=2e-2)

    print("KERNEL_OK")
</pallas_src>

<mosaic_0001>
module attributes {stable_mosaic.version = 11 : i64} {
  func.func @resnet_block_kernel(%arg0: i32, %arg1: memref<1x8x256xf32, #tpu.memory_space<vmem>>, %arg2: memref<1x16x1xf32, #tpu.memory_space<vmem>>, %arg3: memref<9x256xf32, #tpu.memory_space<vmem>>, %arg4: memref<8x8xf32, #tpu.memory_space<vmem>>, %arg5: memref<16x16xf32, #tpu.memory_space<vmem>>, %arg6: memref<8x1xf32, #tpu.memory_space<vmem>>, %arg7: memref<8x1xf32, #tpu.memory_space<vmem>>, %arg8: memref<9x16x8xbf16, #tpu.memory_space<vmem>>, %arg9: memref<16x1xf32, #tpu.memory_space<vmem>>, %arg10: memref<16x1xf32, #tpu.memory_space<vmem>>, %arg11: memref<16x1xf32, #tpu.memory_space<vmem>>, %arg12: memref<9x16x16xbf16, #tpu.memory_space<vmem>>, %arg13: memref<16x1xf32, #tpu.memory_space<vmem>>, %arg14: memref<16x8xbf16, #tpu.memory_space<vmem>>, %arg15: memref<16x1xf32, #tpu.memory_space<vmem>>, %arg16: memref<1x16x256xf32, #tpu.memory_space<vmem>>) attributes {dimension_semantics = [#tpu.dimension_semantics<parallel>], iteration_bounds = array<i64: 2>, scalar_prefetch = 0 : i64, scratch_operands = 0 : i64, tpu.core_type = #tpu.core_type<tc>, window_params = [{transform_indices = @transform_0, window_bounds = array<i64: 1, 8, 256>}, {transform_indices = @transform_1, window_bounds = array<i64: 1, 16, 1>}, {pipeline_mode = #tpu.pipeline_mode<synchronous>, transform_indices = @transform_2, window_bounds = array<i64: 9, 256>}, {pipeline_mode = #tpu.pipeline_mode<synchronous>, transform_indices = @transform_3, window_bounds = array<i64: 8, 8>}, {pipeline_mode = #tpu.pipeline_mode<synchronous>, transform_indices = @transform_4, window_bounds = array<i64: 16, 16>}, {pipeline_mode = #tpu.pipeline_mode<synchronous>, transform_indices = @transform_5, window_bounds = array<i64: 8, 1>}, {pipeline_mode = #tpu.pipeline_mode<synchronous>, transform_indices = @transform_6, window_bounds = array<i64: 8, 1>}, {pipeline_mode = #tpu.pipeline_mode<synchronous>, transform_indices = @transform_7, window_bounds = array<i64: 9, 16, 8>}, {pipeline_mode = #tpu.pipeline_mode<synchronous>, transform_indices = @transform_8, window_bounds = array<i64: 16, 1>}, {pipeline_mode = #tpu.pipeline_mode<synchronous>, transform_indices = @transform_9, window_bounds = array<i64: 16, 1>}, {pipeline_mode = #tpu.pipeline_mode<synchronous>, transform_indices = @transform_10, window_bounds = array<i64: 16, 1>}, {pipeline_mode = #tpu.pipeline_mode<synchronous>, transform_indices = @transform_11, window_bounds = array<i64: 9, 16, 16>}, {pipeline_mode = #tpu.pipeline_mode<synchronous>, transform_indices = @transform_12, window_bounds = array<i64: 16, 1>}, {pipeline_mode = #tpu.pipeline_mode<synchronous>, transform_indices = @transform_13, window_bounds = array<i64: 16, 8>}, {pipeline_mode = #tpu.pipeline_mode<synchronous>, transform_indices = @transform_14, window_bounds = array<i64: 16, 1>}, {transform_indices = @transform_15, window_bounds = array<i64: 1, 16, 256>}]} {
    %c0 = arith.constant 0 : index
    %c0_0 = arith.constant 0 : index
    %c0_1 = arith.constant 0 : index
    %0 = vector.load %arg1[%c0, %c0_0, %c0_1] : memref<1x8x256xf32, #tpu.memory_space<vmem>>, vector<1x8x256xf32>
    %1 = vector.shape_cast %0 : vector<1x8x256xf32> to vector<8x256xf32>
    %c0_2 = arith.constant 0 : index
    %c0_3 = arith.constant 0 : index
    %2 = vector.load %arg6[%c0_2, %c0_3] : memref<8x1xf32, #tpu.memory_space<vmem>>, vector<8x1xf32>
    %c0_4 = arith.constant 0 : index
    %c0_5 = arith.constant 0 : index
    %3 = vector.load %arg7[%c0_4, %c0_5] : memref<8x1xf32, #tpu.memory_space<vmem>>, vector<8x1xf32>
    %cst = arith.constant dense<0.000000e+00> : vector<8xf32>
    %4 = vector.multi_reduction <add>, %1, %cst [1] : vector<8x256xf32> to vector<8xf32>
    %5 = vector.shape_cast %4 : vector<8xf32> to vector<8x1xf32>
    %c0_6 = arith.constant 0 : index
    %c0_7 = arith.constant 0 : index
    %6 = vector.load %arg4[%c0_6, %c0_7] : memref<8x8xf32, #tpu.memory_space<vmem>>, vector<8x8xf32>
    %cst_8 = arith.constant dense<0.000000e+00> : vector<8x1xf32>
    %7 = tpu.matmul %6, %5, %cst_8 {dimension_numbers = #tpu.dot_dimension_numbers<[1], [0], [0], [1], [0, 0, 1, 1], [], []>} : vector<8x8xf32>, vector<8x1xf32>, vector<8x1xf32> -> vector<8x1xf32>
    %cst_9 = arith.constant 0.001953125 : f32
    %8 = vector.broadcast %cst_9 : f32 to vector<8x1xf32>
    %9 = arith.mulf %7, %8 : vector<8x1xf32>
    %10 = vector.broadcast %9 : vector<8x1xf32> to vector<8x256xf32>
    %11 = arith.subf %1, %10 : vector<8x256xf32>
    %12 = arith.mulf %11, %11 : vector<8x256xf32>
    %cst_10 = arith.constant dense<0.000000e+00> : vector<8xf32>
    %13 = vector.multi_reduction <add>, %12, %cst_10 [1] : vector<8x256xf32> to vector<8xf32>
    %14 = vector.shape_cast %13 : vector<8xf32> to vector<8x1xf32>
    %c0_11 = arith.constant 0 : index
    %c0_12 = arith.constant 0 : index
    %15 = vector.load %arg4[%c0_11, %c0_12] : memref<8x8xf32, #tpu.memory_space<vmem>>, vector<8x8xf32>
    %cst_13 = arith.constant dense<0.000000e+00> : vector<8x1xf32>
    %16 = tpu.matmul %15, %14, %cst_13 {dimension_numbers = #tpu.dot_dimension_numbers<[1], [0], [0], [1], [0, 0, 1, 1], [], []>} : vector<8x8xf32>, vector<8x1xf32>, vector<8x1xf32> -> vector<8x1xf32>
    %cst_14 = arith.constant 0.001953125 : f32
    %17 = vector.broadcast %cst_14 : f32 to vector<8x1xf32>
    %18 = arith.mulf %16, %17 : vector<8x1xf32>
    %cst_15 = arith.constant 9.99999997E-7 : f32
    %19 = vector.broadcast %cst_15 : f32 to vector<8x1xf32>
    %20 = arith.addf %18, %19 : vector<8x1xf32>
    %21 = math.rsqrt %20 : vector<8x1xf32>
    %22 = vector.broadcast %21 : vector<8x1xf32> to vector<8x256xf32>
    %23 = arith.mulf %11, %22 : vector<8x256xf32>
    %24 = vector.broadcast %2 : vector<8x1xf32> to vector<8x256xf32>
    %25 = arith.mulf %23, %24 : vector<8x256xf32>
    %26 = vector.broadcast %3 : vector<8x1xf32> to vector<8x256xf32>
    %27 = arith.addf %25, %26 : vector<8x256xf32>
    %28 = arith.negf %27 : vector<8x256xf32>
    %29 = math.exp %28 : vector<8x256xf32>
    %cst_16 = arith.constant 1.000000e+00 : f32
    %30 = vector.broadcast %cst_16 : f32 to vector<8x256xf32>
    %31 = arith.addf %30, %29 : vector<8x256xf32>
    %32 = arith.divf %30, %31 : vector<8x256xf32>
    %33 = arith.mulf %27, %32 : vector<8x256xf32>
    %cst_17 = arith.constant 0.000000e+00 : f32
    %34 = vector.broadcast %cst_17 : f32 to vector<8x128xf32>
    %35 = tpu.concatenate %34, %33, %34 in 1 : vector<8x128xf32>, vector<8x256xf32>, vector<8x128xf32> -> vector<8x512xf32>
    %cst_18 = arith.constant 0.000000e+00 : f32
    %36 = vector.broadcast %cst_18 : f32 to vector<16x256xf32>
    %37 = vector.extract_strided_slice %35 {offsets = [0, 111], sizes = [8, 256], strides = [1, 1]} : vector<8x512xf32> to vector<8x256xf32>
    %c0_19 = arith.constant 0 : index
    %c0_20 = arith.constant 0 : index
    %38 = vector.load %arg3[%c0_19, %c0_20] : memref<9x256xf32, #tpu.memory_space<vmem>>, vector<1x256xf32>
    %39 = vector.broadcast %38 : vector<1x256xf32> to vector<8x256xf32>
    %40 = arith.mulf %37, %39 : vector<8x256xf32>
    %c0_21 = arith.constant 0 : index
    %c0_22 = arith.constant 0 : index
    %c0_23 = arith.constant 0 : index
    %41 = vector.load %arg8[%c0_21, %c0_22, %c0_23] : memref<9x16x8xbf16, #tpu.memory_space<vmem>>, vector<1x16x8xbf16>
    %42 = vector.shape_cast %41 : vector<1x16x8xbf16> to vector<16x8xbf16>
    %43 = arith.truncf %40 : vector<8x256xf32> to vector<8x256xbf16>
    %cst_24 = arith.constant dense<0.000000e+00> : vector<16x256xf32>
    %44 = tpu.matmul %42, %43, %cst_24 {dimension_numbers = #tpu.dot_dimension_numbers<[1], [0], [0], [1], [0, 0, 1, 1], [], []>} : vector<16x8xbf16>, vector<8x256xbf16>, vector<16x256xf32> -> vector<16x256xf32>
    %45 = arith.addf %36, %44 : vector<16x256xf32>
    %46 = vector.extract_strided_slice %35 {offsets = [0, 112], sizes = [8, 256], strides = [1, 1]} : vector<8x512xf32> to vector<8x256xf32>
    %c1 = arith.constant 1 : index
    %c0_25 = arith.constant 0 : index
    %47 = vector.load %arg3[%c1, %c0_25] : memref<9x256xf32, #tpu.memory_space<vmem>>, vector<1x256xf32>
    %48 = vector.broadcast %47 : vector<1x256xf32> to vector<8x256xf32>
    %49 = arith.mulf %46, %48 : vector<8x256xf32>
    %c1_26 = arith.constant 1 : index
    %c0_27 = arith.constant 0 : index
    %c0_28 = arith.constant 0 : index
    %50 = vector.load %arg8[%c1_26, %c0_27, %c0_28] : memref<9x16x8xbf16, #tpu.memory_space<vmem>>, vector<1x16x8xbf16>
    %51 = vector.shape_cast %50 : vector<1x16x8xbf16> to vector<16x8xbf16>
    %52 = arith.truncf %49 : vector<8x256xf32> to vector<8x256xbf16>
    %cst_29 = arith.constant dense<0.000000e+00> : vector<16x256xf32>
    %53 = tpu.matmul %51, %52, %cst_29 {dimension_numbers = #tpu.dot_dimension_numbers<[1], [0], [0], [1], [0, 0, 1, 1], [], []>} : vector<16x8xbf16>, vector<8x256xbf16>, vector<16x256xf32> -> vector<16x256xf32>
    %54 = arith.addf %45, %53 : vector<16x256xf32>
    %55 = vector.extract_strided_slice %35 {offsets = [0, 113], sizes = [8, 256], strides = [1, 1]} : vector<8x512xf32> to vector<8x256xf32>
    %c2 = arith.constant 2 : index
    %c0_30 = arith.constant 0 : index
    %56 = vector.load %arg3[%c2, %c0_30] : memref<9x256xf32, #tpu.memory_space<vmem>>, vector<1x256xf32>
    %57 = vector.broadcast %56 : vector<1x256xf32> to vector<8x256xf32>
    %58 = arith.mulf %55, %57 : vector<8x256xf32>
    %c2_31 = arith.constant 2 : index
    %c0_32 = arith.constant 0 : index
    %c0_33 = arith.constant 0 : index
    %59 = vector.load %arg8[%c2_31, %c0_32, %c0_33] : memref<9x16x8xbf16, #tpu.memory_space<vmem>>, vector<1x16x8xbf16>
    %60 = vector.shape_cast %59 : vector<1x16x8xbf16> to vector<16x8xbf16>
    %61 = arith.truncf %58 : vector<8x256xf32> to vector<8x256xbf16>
    %cst_34 = arith.constant dense<0.000000e+00> : vector<16x256xf32>
    %62 = tpu.matmul %60, %61, %cst_34 {dimension_numbers = #tpu.dot_dimension_numbers<[1], [0], [0], [1], [0, 0, 1, 1], [], []>} : vector<16x8xbf16>, vector<8x256xbf16>, vector<16x256xf32> -> vector<16x256xf32>
    %63 = arith.addf %54, %62 : vector<16x256xf32>
    %64 = vector.extract_strided_slice %35 {offsets = [0, 127], sizes = [8, 256], strides = [1, 1]} : vector<8x512xf32> to vector<8x256xf32>
    %c3 = arith.constant 3 : index
    %c0_35 = arith.constant 0 : index
    %65 = vector.load %arg3[%c3, %c0_35] : memref<9x256xf32, #tpu.memory_space<vmem>>, vector<1x256xf32>
    %66 = vector.broadcast %65 : vector<1x256xf32> to vector<8x256xf32>
    %67 = arith.mulf %64, %66 : vector<8x256xf32>
    %c3_36 = arith.constant 3 : index
    %c0_37 = arith.constant 0 : index
    %c0_38 = arith.constant 0 : index
    %68 = vector.load %arg8[%c3_36, %c0_37, %c0_38] : memref<9x16x8xbf16, #tpu.memory_space<vmem>>, vector<1x16x8xbf16>
    %69 = vector.shape_cast %68 : vector<1x16x8xbf16> to vector<16x8xbf16>
    %70 = arith.truncf %67 : vector<8x256xf32> to vector<8x256xbf16>
    %cst_39 = arith.constant dense<0.000000e+00> : vector<16x256xf32>
    %71 = tpu.matmul %69, %70, %cst_39 {dimension_numbers = #tpu.dot_dimension_numbers<[1], [0], [0], [1], [0, 0, 1, 1], [], []>} : vector<16x8xbf16>, vector<8x256xbf16>, vector<16x256xf32> -> vector<16x256xf32>
    %72 = arith.addf %63, %71 : vector<16x256xf32>
    %c4 = arith.constant 4 : index
    %c0_40 = arith.constant 0 : index
    %c0_41 = arith.constant 0 : index
    %73 = vector.load %arg8[%c4, %c0_40, %c0_41] : memref<9x16x8xbf16, #tpu.memory_space<vmem>>, vector<1x16x8xbf16>
    %74 = vector.shape_cast %73 : vector<1x16x8xbf16> to vector<16x8xbf16>
    %75 = arith.truncf %33 : vector<8x256xf32> to vector<8x256xbf16>
    %cst_42 = arith.constant dense<0.000000e+00> : vector<16x256xf32>
    %76 = tpu.matmul %74, %75, %cst_42 {dimension_numbers = #tpu.dot_dimension_numbers<[1], [0], [0], [1], [0, 0, 1, 1], [], []>} : vector<16x8xbf16>, vector<8x256xbf16>, vector<16x256xf32> -> vector<16x256xf32>
    %77 = arith.addf %72, %76 : vector<16x256xf32>
    %78 = vector.extract_strided_slice %35 {offsets = [0, 129], sizes = [8, 256], strides = [1, 1]} : vector<8x512xf32> to vector<8x256xf32>
    %c5 = arith.constant 5 : index
    %c0_43 = arith.constant 0 : index
    %79 = vector.load %arg3[%c5, %c0_43] : memref<9x256xf32, #tpu.memory_space<vmem>>, vector<1x256xf32>
    %80 = vector.broadcast %79 : vector<1x256xf32> to vector<8x256xf32>
    %81 = arith.mulf %78, %80 : vector<8x256xf32>
    %c5_44 = arith.constant 5 : index
    %c0_45 = arith.constant 0 : index
    %c0_46 = arith.constant 0 : index
    %82 = vector.load %arg8[%c5_44, %c0_45, %c0_46] : memref<9x16x8xbf16, #tpu.memory_space<vmem>>, vector<1x16x8xbf16>
    %83 = vector.shape_cast %82 : vector<1x16x8xbf16> to vector<16x8xbf16>
    %84 = arith.truncf %81 : vector<8x256xf32> to vector<8x256xbf16>
    %cst_47 = arith.constant dense<0.000000e+00> : vector<16x256xf32>
    %85 = tpu.matmul %83, %84, %cst_47 {dimension_numbers = #tpu.dot_dimension_numbers<[1], [0], [0], [1], [0, 0, 1, 1], [], []>} : vector<16x8xbf16>, vector<8x256xbf16>, vector<16x256xf32> -> vector<16x256xf32>
    %86 = arith.addf %77, %85 : vector<16x256xf32>
    %87 = vector.extract_strided_slice %35 {offsets = [0, 143], sizes = [8, 256], strides = [1, 1]} : vector<8x512xf32> to vector<8x256xf32>
    %c6 = arith.constant 6 : index
    %c0_48 = arith.constant 0 : index
    %88 = vector.load %arg3[%c6, %c0_48] : memref<9x256xf32, #tpu.memory_space<vmem>>, vector<1x256xf32>
    %89 = vector.broadcast %88 : vector<1x256xf32> to vector<8x256xf32>
    %90 = arith.mulf %87, %89 : vector<8x256xf32>
    %c6_49 = arith.constant 6 : index
    %c0_50 = arith.constant 0 : index
    %c0_51 = arith.constant 0 : index
    %91 = vector.load %arg8[%c6_49, %c0_50, %c0_51] : memref<9x16x8xbf16, #tpu.memory_space<vmem>>, vector<1x16x8xbf16>
    %92 = vector.shape_cast %91 : vector<1x16x8xbf16> to vector<16x8xbf16>
    %93 = arith.truncf %90 : vector<8x256xf32> to vector<8x256xbf16>
    %cst_52 = arith.constant dense<0.000000e+00> : vector<16x256xf32>
    %94 = tpu.matmul %92, %93, %cst_52 {dimension_numbers = #tpu.dot_dimension_numbers<[1], [0], [0], [1], [0, 0, 1, 1], [], []>} : vector<16x8xbf16>, vector<8x256xbf16>, vector<16x256xf32> -> vector<16x256xf32>
    %95 = arith.addf %86, %94 : vector<16x256xf32>
    %96 = vector.extract_strided_slice %35 {offsets = [0, 144], sizes = [8, 256], strides = [1, 1]} : vector<8x512xf32> to vector<8x256xf32>
    %c7 = arith.constant 7 : index
    %c0_53 = arith.constant 0 : index
    %97 = vector.load %arg3[%c7, %c0_53] : memref<9x256xf32, #tpu.memory_space<vmem>>, vector<1x256xf32>
    %98 = vector.broadcast %97 : vector<1x256xf32> to vector<8x256xf32>
    %99 = arith.mulf %96, %98 : vector<8x256xf32>
    %c7_54 = arith.constant 7 : index
    %c0_55 = arith.constant 0 : index
    %c0_56 = arith.constant 0 : index
    %100 = vector.load %arg8[%c7_54, %c0_55, %c0_56] : memref<9x16x8xbf16, #tpu.memory_space<vmem>>, vector<1x16x8xbf16>
    %101 = vector.shape_cast %100 : vector<1x16x8xbf16> to vector<16x8xbf16>
    %102 = arith.truncf %99 : vector<8x256xf32> to vector<8x256xbf16>
    %cst_57 = arith.constant dense<0.000000e+00> : vector<16x256xf32>
    %103 = tpu.matmul %101, %102, %cst_57 {dimension_numbers = #tpu.dot_dimension_numbers<[1], [0], [0], [1], [0, 0, 1, 1], [], []>} : vector<16x8xbf16>, vector<8x256xbf16>, vector<16x256xf32> -> vector<16x256xf32>
    %104 = arith.addf %95, %103 : vector<16x256xf32>
    %105 = vector.extract_strided_slice %35 {offsets = [0, 145], sizes = [8, 256], strides = [1, 1]} : vector<8x512xf32> to vector<8x256xf32>
    %c8 = arith.constant 8 : index
    %c0_58 = arith.constant 0 : index
    %106 = vector.load %arg3[%c8, %c0_58] : memref<9x256xf32, #tpu.memory_space<vmem>>, vector<1x256xf32>
    %107 = vector.broadcast %106 : vector<1x256xf32> to vector<8x256xf32>
    %108 = arith.mulf %105, %107 : vector<8x256xf32>
    %c8_59 = arith.constant 8 : index
    %c0_60 = arith.constant 0 : index
    %c0_61 = arith.constant 0 : index
    %109 = vector.load %arg8[%c8_59, %c0_60, %c0_61] : memref<9x16x8xbf16, #tpu.memory_space<vmem>>, vector<1x16x8xbf16>
    %110 = vector.shape_cast %109 : vector<1x16x8xbf16> to vector<16x8xbf16>
    %111 = arith.truncf %108 : vector<8x256xf32> to vector<8x256xbf16>
    %cst_62 = arith.constant dense<0.000000e+00> : vector<16x256xf32>
    %112 = tpu.matmul %110, %111, %cst_62 {dimension_numbers = #tpu.dot_dimension_numbers<[1], [0], [0], [1], [0, 0, 1, 1], [], []>} : vector<16x8xbf16>, vector<8x256xbf16>, vector<16x256xf32> -> vector<16x256xf32>
    %113 = arith.addf %104, %112 : vector<16x256xf32>
    %c0_63 = arith.constant 0 : index
    %c0_64 = arith.constant 0 : index
    %114 = vector.load %arg9[%c0_63, %c0_64] : memref<16x1xf32, #tpu.memory_space<vmem>>, vector<16x1xf32>
    %115 = vector.broadcast %114 : vector<16x1xf32> to vector<16x256xf32>
    %116 = arith.addf %113, %115 : vector<16x256xf32>
    %c0_65 = arith.constant 0 : index
    %c0_66 = arith.constant 0 : index
    %c0_67 = arith.constant 0 : index
    %117 = vector.load %arg2[%c0_65, %c0_66, %c0_67] : memref<1x16x1xf32, #tpu.memory_space<vmem>>, vector<1x16x1xf32>
    %118 = vector.shape_cast %117 : vector<1x16x1xf32> to vector<16x1xf32>
    %119 = vector.broadcast %118 : vector<16x1xf32> to vector<16x256xf32>
    %120 = arith.addf %116, %119 : vector<16x256xf32>
    %c0_68 = arith.constant 0 : index
    %c0_69 = arith.constant 0 : index
    %121 = vector.load %arg10[%c0_68, %c0_69] : memref<16x1xf32, #tpu.memory_space<vmem>>, vector<16x1xf32>
    %c0_70 = arith.constant 0 : index
    %c0_71 = arith.constant 0 : index
    %122 = vector.load %arg11[%c0_70, %c0_71] : memref<16x1xf32, #tpu.memory_space<vmem>>, vector<16x1xf32>
    %cst_72 = arith.constant dense<0.000000e+00> : vector<16xf32>
    %123 = vector.multi_reduction <add>, %120, %cst_72 [1] : vector<16x256xf32> to vector<16xf32>
    %124 = vector.shape_cast %123 : vector<16xf32> to vector<16x1xf32>
    %c0_73 = arith.constant 0 : index
    %c0_74 = arith.constant 0 : index
    %125 = vector.load %arg5[%c0_73, %c0_74] : memref<16x16xf32, #tpu.memory_space<vmem>>, vector<16x16xf32>
    %cst_75 = arith.constant dense<0.000000e+00> : vector<16x1xf32>
    %126 = tpu.matmul %125, %124, %cst_75 {dimension_numbers = #tpu.dot_dimension_numbers<[1], [0], [0], [1], [0, 0, 1, 1], [], []>} : vector<16x16xf32>, vector<16x1xf32>, vector<16x1xf32> -> vector<16x1xf32>
    %cst_76 = arith.constant 9.765625E-4 : f32
    %127 = vector.broadcast %cst_76 : f32 to vector<16x1xf32>
    %128 = arith.mulf %126, %127 : vector<16x1xf32>
    %129 = vector.broadcast %128 : vector<16x1xf32> to vector<16x256xf32>
    %130 = arith.subf %120, %129 : vector<16x256xf32>
    %131 = arith.mulf %130, %130 : vector<16x256xf32>
    %cst_77 = arith.constant dense<0.000000e+00> : vector<16xf32>
    %132 = vector.multi_reduction <add>, %131, %cst_77 [1] : vector<16x256xf32> to vector<16xf32>
    %133 = vector.shape_cast %132 : vector<16xf32> to vector<16x1xf32>
    %c0_78 = arith.constant 0 : index
    %c0_79 = arith.constant 0 : index
    %134 = vector.load %arg5[%c0_78, %c0_79] : memref<16x16xf32, #tpu.memory_space<vmem>>, vector<16x16xf32>
    %cst_80 = arith.constant dense<0.000000e+00> : vector<16x1xf32>
    %135 = tpu.matmul %134, %133, %cst_80 {dimension_numbers = #tpu.dot_dimension_numbers<[1], [0], [0], [1], [0, 0, 1, 1], [], []>} : vector<16x16xf32>, vector<16x1xf32>, vector<16x1xf32> -> vector<16x1xf32>
    %cst_81 = arith.constant 9.765625E-4 : f32
    %136 = vector.broadcast %cst_81 : f32 to vector<16x1xf32>
    %137 = arith.mulf %135, %136 : vector<16x1xf32>
    %cst_82 = arith.constant 9.99999997E-7 : f32
    %138 = vector.broadcast %cst_82 : f32 to vector<16x1xf32>
    %139 = arith.addf %137, %138 : vector<16x1xf32>
    %140 = math.rsqrt %139 : vector<16x1xf32>
    %141 = vector.broadcast %140 : vector<16x1xf32> to vector<16x256xf32>
    %142 = arith.mulf %130, %141 : vector<16x256xf32>
    %143 = vector.broadcast %121 : vector<16x1xf32> to vector<16x256xf32>
    %144 = arith.mulf %142, %143 : vector<16x256xf32>
    %145 = vector.broadcast %122 : vector<16x1xf32> to vector<16x256xf32>
    %146 = arith.addf %144, %145 : vector<16x256xf32>
    %147 = arith.negf %146 : vector<16x256xf32>
    %148 = math.exp %147 : vector<16x256xf32>
    %cst_83 = arith.constant 1.000000e+00 : f32
    %149 = vector.broadcast %cst_83 : f32 to vector<16x256xf32>
    %150 = arith.addf %149, %148 : vector<16x256xf32>
    %151 = arith.divf %149, %150 : vector<16x256xf32>
    %152 = arith.mulf %146, %151 : vector<16x256xf32>
    %cst_84 = arith.constant 0.000000e+00 : f32
    %153 = vector.broadcast %cst_84 : f32 to vector<16x128xf32>
    %154 = tpu.concatenate %153, %152, %153 in 1 : vector<16x128xf32>, vector<16x256xf32>, vector<16x128xf32> -> vector<16x512xf32>
    %cst_85 = arith.constant 0.000000e+00 : f32
    %155 = vector.broadcast %cst_85 : f32 to vector<16x256xf32>
    %156 = vector.extract_strided_slice %154 {offsets = [0, 111], sizes = [16, 256], strides = [1, 1]} : vector<16x512xf32> to vector<16x256xf32>
    %c0_86 = arith.constant 0 : index
    %c0_87 = arith.constant 0 : index
    %157 = vector.load %arg3[%c0_86, %c0_87] : memref<9x256xf32, #tpu.memory_space<vmem>>, vector<1x256xf32>
    %158 = vector.broadcast %157 : vector<1x256xf32> to vector<16x256xf32>
    %159 = arith.mulf %156, %158 : vector<16x256xf32>
    %c0_88 = arith.constant 0 : index
    %c0_89 = arith.constant 0 : index
    %c0_90 = arith.constant 0 : index
    %160 = vector.load %arg12[%c0_88, %c0_89, %c0_90] : memref<9x16x16xbf16, #tpu.memory_space<vmem>>, vector<1x16x16xbf16>
    %161 = vector.shape_cast %160 : vector<1x16x16xbf16> to vector<16x16xbf16>
    %162 = arith.truncf %159 : vector<16x256xf32> to vector<16x256xbf16>
    %cst_91 = arith.constant dense<0.000000e+00> : vector<16x256xf32>
    %163 = tpu.matmul %161, %162, %cst_91 {dimension_numbers = #tpu.dot_dimension_numbers<[1], [0], [0], [1], [0, 0, 1, 1], [], []>} : vector<16x16xbf16>, vector<16x256xbf16>, vector<16x256xf32> -> vector<16x256xf32>
    %164 = arith.addf %155, %163 : vector<16x256xf32>
    %165 = vector.extract_strided_slice %154 {offsets = [0, 112], sizes = [16, 256], strides = [1, 1]} : vector<16x512xf32> to vector<16x256xf32>
    %c1_92 = arith.constant 1 : index
    %c0_93 = arith.constant 0 : index
    %166 = vector.load %arg3[%c1_92, %c0_93] : memref<9x256xf32, #tpu.memory_space<vmem>>, vector<1x256xf32>
    %167 = vector.broadcast %166 : vector<1x256xf32> to vector<16x256xf32>
    %168 = arith.mulf %165, %167 : vector<16x256xf32>
    %c1_94 = arith.constant 1 : index
    %c0_95 = arith.constant 0 : index
    %c0_96 = arith.constant 0 : index
    %169 = vector.load %arg12[%c1_94, %c0_95, %c0_96] : memref<9x16x16xbf16, #tpu.memory_space<vmem>>, vector<1x16x16xbf16>
    %170 = vector.shape_cast %169 : vector<1x16x16xbf16> to vector<16x16xbf16>
    %171 = arith.truncf %168 : vector<16x256xf32> to vector<16x256xbf16>
    %cst_97 = arith.constant dense<0.000000e+00> : vector<16x256xf32>
    %172 = tpu.matmul %170, %171, %cst_97 {dimension_numbers = #tpu.dot_dimension_numbers<[1], [0], [0], [1], [0, 0, 1, 1], [], []>} : vector<16x16xbf16>, vector<16x256xbf16>, vector<16x256xf32> -> vector<16x256xf32>
    %173 = arith.addf %164, %172 : vector<16x256xf32>
    %174 = vector.extract_strided_slice %154 {offsets = [0, 113], sizes = [16, 256], strides = [1, 1]} : vector<16x512xf32> to vector<16x256xf32>
    %c2_98 = arith.constant 2 : index
    %c0_99 = arith.constant 0 : index
    %175 = vector.load %arg3[%c2_98, %c0_99] : memref<9x256xf32, #tpu.memory_space<vmem>>, vector<1x256xf32>
    %176 = vector.broadcast %175 : vector<1x256xf32> to vector<16x256xf32>
    %177 = arith.mulf %174, %176 : vector<16x256xf32>
    %c2_100 = arith.constant 2 : index
    %c0_101 = arith.constant 0 : index
    %c0_102 = arith.constant 0 : index
    %178 = vector.load %arg12[%c2_100, %c0_101, %c0_102] : memref<9x16x16xbf16, #tpu.memory_space<vmem>>, vector<1x16x16xbf16>
    %179 = vector.shape_cast %178 : vector<1x16x16xbf16> to vector<16x16xbf16>
    %180 = arith.truncf %177 : vector<16x256xf32> to vector<16x256xbf16>
    %cst_103 = arith.constant dense<0.000000e+00> : vector<16x256xf32>
    %181 = tpu.matmul %179, %180, %cst_103 {dimension_numbers = #tpu.dot_dimension_numbers<[1], [0], [0], [1], [0, 0, 1, 1], [], []>} : vector<16x16xbf16>, vector<16x256xbf16>, vector<16x256xf32> -> vector<16x256xf32>
    %182 = arith.addf %173, %181 : vector<16x256xf32>
    %183 = vector.extract_strided_slice %154 {offsets = [0, 127], sizes = [16, 256], strides = [1, 1]} : vector<16x512xf32> to vector<16x256xf32>
    %c3_104 = arith.constant 3 : index
    %c0_105 = arith.constant 0 : index
    %184 = vector.load %arg3[%c3_104, %c0_105] : memref<9x256xf32, #tpu.memory_space<vmem>>, vector<1x256xf32>
    %185 = vector.broadcast %184 : vector<1x256xf32> to vector<16x256xf32>
    %186 = arith.mulf %183, %185 : vector<16x256xf32>
    %c3_106 = arith.constant 3 : index
    %c0_107 = arith.constant 0 : index
    %c0_108 = arith.constant 0 : index
    %187 = vector.load %arg12[%c3_106, %c0_107, %c0_108] : memref<9x16x16xbf16, #tpu.memory_space<vmem>>, vector<1x16x16xbf16>
    %188 = vector.shape_cast %187 : vector<1x16x16xbf16> to vector<16x16xbf16>
    %189 = arith.truncf %186 : vector<16x256xf32> to vector<16x256xbf16>
    %cst_109 = arith.constant dense<0.000000e+00> : vector<16x256xf32>
    %190 = tpu.matmul %188, %189, %cst_109 {dimension_numbers = #tpu.dot_dimension_numbers<[1], [0], [0], [1], [0, 0, 1, 1], [], []>} : vector<16x16xbf16>, vector<16x256xbf16>, vector<16x256xf32> -> vector<16x256xf32>
    %191 = arith.addf %182, %190 : vector<16x256xf32>
    %c4_110 = arith.constant 4 : index
    %c0_111 = arith.constant 0 : index
    %c0_112 = arith.constant 0 : index
    %192 = vector.load %arg12[%c4_110, %c0_111, %c0_112] : memref<9x16x16xbf16, #tpu.memory_space<vmem>>, vector<1x16x16xbf16>
    %193 = vector.shape_cast %192 : vector<1x16x16xbf16> to vector<16x16xbf16>
    %194 = arith.truncf %152 : vector<16x256xf32> to vector<16x256xbf16>
    %cst_113 = arith.constant dense<0.000000e+00> : vector<16x256xf32>
    %195 = tpu.matmul %193, %194, %cst_113 {dimension_numbers = #tpu.dot_dimension_numbers<[1], [0], [0], [1], [0, 0, 1, 1], [], []>} : vector<16x16xbf16>, vector<16x256xbf16>, vector<16x256xf32> -> vector<16x256xf32>
    %196 = arith.addf %191, %195 : vector<16x256xf32>
    %197 = vector.extract_strided_slice %154 {offsets = [0, 129], sizes = [16, 256], strides = [1, 1]} : vector<16x512xf32> to vector<16x256xf32>
    %c5_114 = arith.constant 5 : index
    %c0_115 = arith.constant 0 : index
    %198 = vector.load %arg3[%c5_114, %c0_115] : memref<9x256xf32, #tpu.memory_space<vmem>>, vector<1x256xf32>
    %199 = vector.broadcast %198 : vector<1x256xf32> to vector<16x256xf32>
    %200 = arith.mulf %197, %199 : vector<16x256xf32>
    %c5_116 = arith.constant 5 : index
    %c0_117 = arith.constant 0 : index
    %c0_118 = arith.constant 0 : index
    %201 = vector.load %arg12[%c5_116, %c0_117, %c0_118] : memref<9x16x16xbf16, #tpu.memory_space<vmem>>, vector<1x16x16xbf16>
    %202 = vector.shape_cast %201 : vector<1x16x16xbf16> to vector<16x16xbf16>
    %203 = arith.truncf %200 : vector<16x256xf32> to vector<16x256xbf16>
    %cst_119 = arith.constant dense<0.000000e+00> : vector<16x256xf32>
    %204 = tpu.matmul %202, %203, %cst_119 {dimension_numbers = #tpu.dot_dimension_numbers<[1], [0], [0], [1], [0, 0, 1, 1], [], []>} : vector<16x16xbf16>, vector<16x256xbf16>, vector<16x256xf32> -> vector<16x256xf32>
    %205 = arith.addf %196, %204 : vector<16x256xf32>
    %206 = vector.extract_strided_slice %154 {offsets = [0, 143], sizes = [16, 256], strides = [1, 1]} : vector<16x512xf32> to vector<16x256xf32>
    %c6_120 = arith.constant 6 : index
    %c0_121 = arith.constant 0 : index
    %207 = vector.load %arg3[%c6_120, %c0_121] : memref<9x256xf32, #tpu.memory_space<vmem>>, vector<1x256xf32>
    %208 = vector.broadcast %207 : vector<1x256xf32> to vector<16x256xf32>
    %209 = arith.mulf %206, %208 : vector<16x256xf32>
    %c6_122 = arith.constant 6 : index
    %c0_123 = arith.constant 0 : index
    %c0_124 = arith.constant 0 : index
    %210 = vector.load %arg12[%c6_122, %c0_123, %c0_124] : memref<9x16x16xbf16, #tpu.memory_space<vmem>>, vector<1x16x16xbf16>
    %211 = vector.shape_cast %210 : vector<1x16x16xbf16> to vector<16x16xbf16>
    %212 = arith.truncf %209 : vector<16x256xf32> to vector<16x256xbf16>
    %cst_125 = arith.constant dense<0.000000e+00> : vector<16x256xf32>
    %213 = tpu.matmul %211, %212, %cst_125 {dimension_numbers = #tpu.dot_dimension_numbers<[1], [0], [0], [1], [0, 0, 1, 1], [], []>} : vector<16x16xbf16>, vector<16x256xbf16>, vector<16x256xf32> -> vector<16x256xf32>
    %214 = arith.addf %205, %213 : vector<16x256xf32>
    %215 = vector.extract_strided_slice %154 {offsets = [0, 144], sizes = [16, 256], strides = [1, 1]} : vector<16x512xf32> to vector<16x256xf32>
    %c7_126 = arith.constant 7 : index
    %c0_127 = arith.constant 0 : index
    %216 = vector.load %arg3[%c7_126, %c0_127] : memref<9x256xf32, #tpu.memory_space<vmem>>, vector<1x256xf32>
    %217 = vector.broadcast %216 : vector<1x256xf32> to vector<16x256xf32>
    %218 = arith.mulf %215, %217 : vector<16x256xf32>
    %c7_128 = arith.constant 7 : index
    %c0_129 = arith.constant 0 : index
    %c0_130 = arith.constant 0 : index
    %219 = vector.load %arg12[%c7_128, %c0_129, %c0_130] : memref<9x16x16xbf16, #tpu.memory_space<vmem>>, vector<1x16x16xbf16>
    %220 = vector.shape_cast %219 : vector<1x16x16xbf16> to vector<16x16xbf16>
    %221 = arith.truncf %218 : vector<16x256xf32> to vector<16x256xbf16>
    %cst_131 = arith.constant dense<0.000000e+00> : vector<16x256xf32>
    %222 = tpu.matmul %220, %221, %cst_131 {dimension_numbers = #tpu.dot_dimension_numbers<[1], [0], [0], [1], [0, 0, 1, 1], [], []>} : vector<16x16xbf16>, vector<16x256xbf16>, vector<16x256xf32> -> vector<16x256xf32>
    %223 = arith.addf %214, %222 : vector<16x256xf32>
    %224 = vector.extract_strided_slice %154 {offsets = [0, 145], sizes = [16, 256], strides = [1, 1]} : vector<16x512xf32> to vector<16x256xf32>
    %c8_132 = arith.constant 8 : index
    %c0_133 = arith.constant 0 : index
    %225 = vector.load %arg3[%c8_132, %c0_133] : memref<9x256xf32, #tpu.memory_space<vmem>>, vector<1x256xf32>
    %226 = vector.broadcast %225 : vector<1x256xf32> to vector<16x256xf32>
    %227 = arith.mulf %224, %226 : vector<16x256xf32>
    %c8_134 = arith.constant 8 : index
    %c0_135 = arith.constant 0 : index
    %c0_136 = arith.constant 0 : index
    %228 = vector.load %arg12[%c8_134, %c0_135, %c0_136] : memref<9x16x16xbf16, #tpu.memory_space<vmem>>, vector<1x16x16xbf16>
    %229 = vector.shape_cast %228 : vector<1x16x16xbf16> to vector<16x16xbf16>
    %230 = arith.truncf %227 : vector<16x256xf32> to vector<16x256xbf16>
    %cst_137 = arith.constant dense<0.000000e+00> : vector<16x256xf32>
    %231 = tpu.matmul %229, %230, %cst_137 {dimension_numbers = #tpu.dot_dimension_numbers<[1], [0], [0], [1], [0, 0, 1, 1], [], []>} : vector<16x16xbf16>, vector<16x256xbf16>, vector<16x256xf32> -> vector<16x256xf32>
    %232 = arith.addf %223, %231 : vector<16x256xf32>
    %c0_138 = arith.constant 0 : index
    %c0_139 = arith.constant 0 : index
    %233 = vector.load %arg13[%c0_138, %c0_139] : memref<16x1xf32, #tpu.memory_space<vmem>>, vector<16x1xf32>
    %234 = vector.broadcast %233 : vector<16x1xf32> to vector<16x256xf32>
    %235 = arith.addf %232, %234 : vector<16x256xf32>
    %c0_140 = arith.constant 0 : index
    %c0_141 = arith.constant 0 : index
    %236 = vector.load %arg14[%c0_140, %c0_141] : memref<16x8xbf16, #tpu.memory_space<vmem>>, vector<16x8xbf16>
    %237 = arith.truncf %1 : vector<8x256xf32> to vector<8x256xbf16>
    %cst_142 = arith.constant dense<0.000000e+00> : vector<16x256xf32>
    %238 = tpu.matmul %236, %237, %cst_142 {dimension_numbers = #tpu.dot_dimension_numbers<[1], [0], [0], [1], [0, 0, 1, 1], [], []>} : vector<16x8xbf16>, vector<8x256xbf16>, vector<16x256xf32> -> vector<16x256xf32>
    %c0_143 = arith.constant 0 : index
    %c0_144 = arith.constant 0 : index
    %239 = vector.load %arg15[%c0_143, %c0_144] : memref<16x1xf32, #tpu.memory_space<vmem>>, vector<16x1xf32>
    %240 = vector.broadcast %239 : vector<16x1xf32> to vector<16x256xf32>
    %241 = arith.addf %238, %240 : vector<16x256xf32>
    %242 = arith.addf %241, %235 : vector<16x256xf32>
    %cst_145 = arith.constant 1.000000e+00 : f32
    %243 = vector.broadcast %cst_145 : f32 to vector<16x256xf32>
    %244 = arith.mulf %242, %243 : vector<16x256xf32>
    %c0_146 = arith.constant 0 : index
    %c0_147 = arith.constant 0 : index
    %c0_148 = arith.constant 0 : index
    %245 = vector.load %arg16[%c0_146, %c0_147, %c0_148] : memref<1x16x256xf32, #tpu.memory_space<vmem>>, vector<1x16x256xf32>
    %246 = vector.shape_cast %245 : vector<1x16x256xf32> to vector<16x256xf32>
    %247 = vector.shape_cast %244 : vector<16x256xf32> to vector<1x16x256xf32>
    tpu.vector_store %arg16[%c0_146, %c0_147, %c0_148], %247 {strides = array<i32>} : memref<1x16x256xf32, #tpu.memory_space<vmem>>, vector<1x16x256xf32>,
    return
  }
  func.func @transform_0(%arg0: i32) -> (i32, i32, i32) {
    %c0_i32 = arith.constant 0 : i32
    %c0_i32_0 = arith.constant 0 : i32
    %c0_i32_1 = arith.constant 0 : i32
    return %arg0, %c0_i32, %c0_i32_0 : i32, i32, i32
  }
  func.func @transform_1(%arg0: i32) -> (i32, i32, i32) {
    %c0_i32 = arith.constant 0 : i32
    %c0_i32_0 = arith.constant 0 : i32
    %c0_i32_1 = arith.constant 0 : i32
    return %arg0, %c0_i32, %c0_i32_0 : i32, i32, i32
  }
  func.func @transform_2(%arg0: i32) -> (i32, i32) {
    %c0_i32 = arith.constant 0 : i32
    %c0_i32_0 = arith.constant 0 : i32
    %c0_i32_1 = arith.constant 0 : i32
    return %c0_i32, %c0_i32_0 : i32, i32
  }
  func.func @transform_3(%arg0: i32) -> (i32, i32) {
    %c0_i32 = arith.constant 0 : i32
    %c0_i32_0 = arith.constant 0 : i32
    %c0_i32_1 = arith.constant 0 : i32
    return %c0_i32, %c0_i32_0 : i32, i32
  }
  func.func @transform_4(%arg0: i32) -> (i32, i32) {
    %c0_i32 = arith.constant 0 : i32
    %c0_i32_0 = arith.constant 0 : i32
    %c0_i32_1 = arith.constant 0 : i32
    return %c0_i32, %c0_i32_0 : i32, i32
  }
  func.func @transform_5(%arg0: i32) -> (i32, i32) {
    %c0_i32 = arith.constant 0 : i32
    %c0_i32_0 = arith.constant 0 : i32
    %c0_i32_1 = arith.constant 0 : i32
    return %c0_i32, %c0_i32_0 : i32, i32
  }
  func.func @transform_6(%arg0: i32) -> (i32, i32) {
    %c0_i32 = arith.constant 0 : i32
    %c0_i32_0 = arith.constant 0 : i32
    %c0_i32_1 = arith.constant 0 : i32
    return %c0_i32, %c0_i32_0 : i32, i32
  }
  func.func @transform_7(%arg0: i32) -> (i32, i32, i32) {
    %c0_i32 = arith.constant 0 : i32
    %c0_i32_0 = arith.constant 0 : i32
    %c0_i32_1 = arith.constant 0 : i32
    %c0_i32_2 = arith.constant 0 : i32
    return %c0_i32, %c0_i32_0, %c0_i32_1 : i32, i32, i32
  }
  func.func @transform_8(%arg0: i32) -> (i32, i32) {
    %c0_i32 = arith.constant 0 : i32
    %c0_i32_0 = arith.constant 0 : i32
    %c0_i32_1 = arith.constant 0 : i32
    return %c0_i32, %c0_i32_0 : i32, i32
  }
  func.func @transform_9(%arg0: i32) -> (i32, i32) {
    %c0_i32 = arith.constant 0 : i32
    %c0_i32_0 = arith.constant 0 : i32
    %c0_i32_1 = arith.constant 0 : i32
    return %c0_i32, %c0_i32_0 : i32, i32
  }
  func.func @transform_10(%arg0: i32) -> (i32, i32) {
    %c0_i32 = arith.constant 0 : i32
    %c0_i32_0 = arith.constant 0 : i32
    %c0_i32_1 = arith.constant 0 : i32
    return %c0_i32, %c0_i32_0 : i32, i32
  }
  func.func @transform_11(%arg0: i32) -> (i32, i32, i32) {
    %c0_i32 = arith.constant 0 : i32
    %c0_i32_0 = arith.constant 0 : i32
    %c0_i32_1 = arith.constant 0 : i32
    %c0_i32_2 = arith.constant 0 : i32
    return %c0_i32, %c0_i32_0, %c0_i32_1 : i32, i32, i32
  }
  func.func @transform_12(%arg0: i32) -> (i32, i32) {
    %c0_i32 = arith.constant 0 : i32
    %c0_i32_0 = arith.constant 0 : i32
    %c0_i32_1 = arith.constant 0 : i32
    return %c0_i32, %c0_i32_0 : i32, i32
  }
  func.func @transform_13(%arg0: i32) -> (i32, i32) {
    %c0_i32 = arith.constant 0 : i32
    %c0_i32_0 = arith.constant 0 : i32
    %c0_i32_1 = arith.constant 0 : i32
    return %c0_i32, %c0_i32_0 : i32, i32
  }
  func.func @transform_14(%arg0: i32) -> (i32, i32) {
    %c0_i32 = arith.constant 0 : i32
    %c0_i32_0 = arith.constant 0 : i32
    %c0_i32_1 = arith.constant 0 : i32
    return %c0_i32, %c0_i32_0 : i32, i32
  }
  func.func @transform_15(%arg0: i32) -> (i32, i32, i32) {
    %c0_i32 = arith.constant 0 : i32
    %c0_i32_0 = arith.constant 0 : i32
    %c0_i32_1 = arith.constant 0 : i32
    return %arg0, %c0_i32, %c0_i32_0 : i32, i32, i32
  }
}

</mosaic_0001>

<llo_original>
// kernel: tpu_custom_call.1
$region0: #{tpu_custom_call.1}
  #allocation0 [shape = 'u32[]', space=smem, size = 0x4, offset = 0x4, fixed_abs, tag = 'smem constant byte address 0x4 - core index']
  #allocation1 [shape = 'u32[72,128]{1,0:T(1,128)}', space=vmem, size = 0x9000, scoped, tag = 'internal scratch']
  %s0 = inlined_call_operand.vmem [shape: f32[2,8,256], index: 0, kind: input, shape index: {}]
  %s1 = inlined_call_operand.vmem [shape: f32[2,16,1], index: 1, kind: input, shape index: {}]
  %s2 = inlined_call_operand.vmem [shape: f32[9,256], index: 2, kind: input, shape index: {}]
  %s3 = inlined_call_operand.vmem [shape: f32[8,8], index: 3, kind: input, shape index: {}]
  %s4 = inlined_call_operand.vmem [shape: f32[16,16], index: 4, kind: input, shape index: {}]
  %s5 = inlined_call_operand.vmem [shape: f32[8,1], index: 5, kind: input, shape index: {}]
  %s6 = inlined_call_operand.vmem [shape: f32[8,1], index: 6, kind: input, shape index: {}]
  %s7 = inlined_call_operand.vmem [shape: bf16[9,16,8], index: 7, kind: input, shape index: {}]
  %s8 = inlined_call_operand.vmem [shape: f32[16,1], index: 8, kind: input, shape index: {}]
  %s9 = inlined_call_operand.vmem [shape: f32[16,1], index: 9, kind: input, shape index: {}]
  %s10 = inlined_call_operand.vmem [shape: f32[16,1], index: 10, kind: input, shape index: {}]
  %s11 = inlined_call_operand.vmem [shape: bf16[9,16,16], index: 11, kind: input, shape index: {}]
  %s12 = inlined_call_operand.vmem [shape: f32[16,1], index: 12, kind: input, shape index: {}]
  %s13 = inlined_call_operand.vmem [shape: bf16[16,8], index: 13, kind: input, shape index: {}]
  %s14 = inlined_call_operand.vmem [shape: f32[16,1], index: 14, kind: input, shape index: {}]
  %s15 = inlined_call_operand.hbm [shape: f32[2,16,256], index: 15, kind: output, shape index: {}]
  %s16 = sld [smem:[#allocation0]]
  $region93: #{tpu_custom_call.1} parent=0
    _
  %s18 = ssub.s32 1, %s16
  %s19 = scalar_select 0, %s18, %s16
  $region1: #{tpu_custom_call.1} parent=0
    #allocation2 [shape = 'u8[32768]{0}', space=vmem, size = 0x8000, scoped, tag = 'output window, operand 0']
    #allocation3 [shape = 's32[2]{0}', space=sflag, size = 0x8, scoped, tag = 'scoped memory for tpu_custom_call.1']
    %20 = vsyncpa [#allocation3], 0
    %s21 = scalar_lea.sflag [#allocation3], 1
    %22 = vsyncpa %s21, 0
    loop: start=0, step=1, limit=4
    $region2: #{tpu_custom_call.1} parent=1 // loop_pre_header
      _
    $region3: #{tpu_custom_call.1} parent=1 // loop_header
      %s24 = sphi 0, %s28
      %p25 = scmp.ge.s32.totalorder %s24, 4
      %s34 = sphi 0, %s36
      %s37 = sphi 0, %s34
      %s38 = sphi 0, %s37
      %s54 = sphi 0, %s38
      %s60 = sphi 0, %s62
      %s63 = sphi 0, %s60
      %s64 = sphi 0, %s63
      %s80 = sphi 0, %s64
      %s84 = sphi 0, %s84
      %s86 = sphi 0, %s84
      %s87 = sphi 0, %s86
      %s101 = sphi 0, %s87
      %s105 = sphi 0, %s105
      %s107 = sphi 0, %s105
      %s108 = sphi 0, %s107
      %s122 = sphi 0, %s108
      %s126 = sphi 0, %s126
      %s128 = sphi 0, %s126
      %s129 = sphi 0, %s128
      %s143 = sphi 0, %s129
      %s147 = sphi 0, %s147
      %s149 = sphi 0, %s147
      %s150 = sphi 0, %s149
      %s164 = sphi 0, %s150
      %s168 = sphi 0, %s168
      %s170 = sphi 0, %s168
      %s171 = sphi 0, %s170
      %s185 = sphi 0, %s171
      %s189 = sphi 0, %s189
      %s191 = sphi 0, %s189
      %s192 = sphi 0, %s191
      %s206 = sphi 0, %s192
      %s210 = sphi 0, %s210
      %s212 = sphi 0, %s210
      %s213 = sphi 0, %s212
      %s227 = sphi 0, %s213
      %s231 = sphi 0, %s231
      %s233 = sphi 0, %s231
      %s234 = sphi 0, %s233
      %s248 = sphi 0, %s234
      %s252 = sphi 0, %s252
      %s254 = sphi 0, %s252
      %s255 = sphi 0, %s254
      %s269 = sphi 0, %s255
      %s273 = sphi 0, %s273
      %s275 = sphi 0, %s273
      %s276 = sphi 0, %s275
      %s290 = sphi 0, %s276
      %s294 = sphi 0, %s294
      %s296 = sphi 0, %s294
      %s297 = sphi 0, %s296
      %s311 = sphi 0, %s297
      %s315 = sphi 0, %s315
      %s317 = sphi 0, %s315
      %s318 = sphi 0, %s317
      %s332 = sphi 0, %s318
      %s336 = sphi 0, %s336
      %s338 = sphi 0, %s336
      %s339 = sphi 0, %s338
      %s353 = sphi 0, %s339
      %s359 = sphi 0, %s361
      %s362 = sphi 0, %s359
      %s363 = sphi 0, %s362
      %s379 = sphi 0, %s363
    $region4: #{tpu_custom_call.1} parent=1 // loop_header_branch
      %27 = sbr.rel (%p25) target = $region8
    $region5: #{tpu_custom_call.1} parent=1 // loop_body
      %s29 = ssub.s32 %s24, 1
      %s30 = ssub.s32 %s24, 2
      %s31 = sadd.s32 %s24, 1
      %s32 = ssub.s32 %s24, %s31
      %p33 = scmp.eq.s32.totalorder %s32, 0
      %s35 = sadd.s32 %s34, 1
      %s36 = scalar_select %p33, %s34, %s35
      %p39 = pneg %p33
      %p40 = scmp.eq.s32.totalorder %s24, 1
      %p41 = por %p39, %p40
      %p42 = scmp.ne.s32.totalorder %s34, %s37
      %p43 = scmp.eq.s32.totalorder %s24, 0
      %p44 = por %p42, %p43
      %p45 = scmp.ne.s32.totalorder %s34, %s37
      %p46 = scmp.eq.s32.totalorder %s29, 1
      %p47 = por %p45, %p46
      %p48 = scmp.ne.s32.totalorder %s37, %s38
      %p49 = scmp.eq.s32.totalorder %s29, 0
      %p50 = por %p48, %p49
      %p51 = scmp.ne.s32.totalorder %s37, %s38
      %p52 = scmp.eq.s32.totalorder %s30, 1
      %p53 = por %p51, %p52
      %p55 = scmp.ne.s32.totalorder %s38, %s54
      %p56 = scmp.eq.s32.totalorder %s30, 0
      %p57 = por %p55, %p56
      %s58 = ssub.s32 %s24, %s31
      %p59 = scmp.eq.s32.totalorder %s58, 0
      %s61 = sadd.s32 %s60, 1
      %s62 = scalar_select %p59, %s60, %s61
      %p65 = pneg %p59
      %p66 = scmp.eq.s32.totalorder %s24, 1
      %p67 = por %p65, %p66
      %p68 = scmp.ne.s32.totalorder %s60, %s63
      %p69 = scmp.eq.s32.totalorder %s24, 0
      %p70 = por %p68, %p69
      %p71 = scmp.ne.s32.totalorder %s60, %s63
      %p72 = scmp.eq.s32.totalorder %s29, 1
      %p73 = por %p71, %p72
      %p74 = scmp.ne.s32.totalorder %s63, %s64
      %p75 = scmp.eq.s32.totalorder %s29, 0
      %p76 = por %p74, %p75
      %p77 = scmp.ne.s32.totalorder %s63, %s64
      %p78 = scmp.eq.s32.totalorder %s30, 1
      %p79 = por %p77, %p78
      %p81 = scmp.ne.s32.totalorder %s64, %s80
      %p82 = scmp.eq.s32.totalorder %s30, 0
      %p83 = por %p81, %p82
      %s85 = sadd.s32 %s84, 1
      %p88 = scmp.eq.s32.totalorder %s24, 1
      %p89 = scmp.ne.s32.totalorder %s84, %s86
      %p90 = scmp.eq.s32.totalorder %s24, 0
      %p91 = por %p89, %p90
      %p92 = scmp.ne.s32.totalorder %s84, %s86
      %p93 = scmp.eq.s32.totalorder %s29, 1
      %p94 = por %p92, %p93
      %p95 = scmp.ne.s32.totalorder %s86, %s87
      %p96 = scmp.eq.s32.totalorder %s29, 0
      %p97 = por %p95, %p96
      %p98 = scmp.ne.s32.totalorder %s86, %s87
      %p99 = scmp.eq.s32.totalorder %s30, 1
      %p100 = por %p98, %p99
      %p102 = scmp.ne.s32.totalorder %s87, %s101
      %p103 = scmp.eq.s32.totalorder %s30, 0
      %p104 = por %p102, %p103
      %s106 = sadd.s32 %s105, 1
      %p109 = scmp.eq.s32.totalorder %s24, 1
      %p110 = scmp.ne.s32.totalorder %s105, %s107
      %p111 = scmp.eq.s32.totalorder %s24, 0
      %p112 = por %p110, %p111
      %p113 = scmp.ne.s32.totalorder %s105, %s107
      %p114 = scmp.eq.s32.totalorder %s29, 1
      %p115 = por %p113, %p114
      %p116 = scmp.ne.s32.totalorder %s107, %s108
      %p117 = scmp.eq.s32.totalorder %s29, 0
      %p118 = por %p116, %p117
      %p119 = scmp.ne.s32.totalorder %s107, %s108
      %p120 = scmp.eq.s32.totalorder %s30, 1
      %p121 = por %p119, %p120
      %p123 = scmp.ne.s32.totalorder %s108, %s122
      %p124 = scmp.eq.s32.totalorder %s30, 0
      %p125 = por %p123, %p124
      %s127 = sadd.s32 %s126, 1
      %p130 = scmp.eq.s32.totalorder %s24, 1
      %p131 = scmp.ne.s32.totalorder %s126, %s128
      %p132 = scmp.eq.s32.totalorder %s24, 0
      %p133 = por %p131, %p132
      %p134 = scmp.ne.s32.totalorder %s126, %s128
      %p135 = scmp.eq.s32.totalorder %s29, 1
      %p136 = por %p134, %p135
      %p137 = scmp.ne.s32.totalorder %s128, %s129
      %p138 = scmp.eq.s32.totalorder %s29, 0
      %p139 = por %p137, %p138
      %p140 = scmp.ne.s32.totalorder %s128, %s129
      %p141 = scmp.eq.s32.totalorder %s30, 1
      %p142 = por %p140, %p141
      %p144 = scmp.ne.s32.totalorder %s129, %s143
      %p145 = scmp.eq.s32.totalorder %s30, 0
      %p146 = por %p144, %p145
      %s148 = sadd.s32 %s147, 1
      %p151 = scmp.eq.s32.totalorder %s24, 1
      %p152 = scmp.ne.s32.totalorder %s147, %s149
      %p153 = scmp.eq.s32.totalorder %s24, 0
      %p154 = por %p152, %p153
      %p155 = scmp.ne.s32.totalorder %s147, %s149
      %p156 = scmp.eq.s32.totalorder %s29, 1
      %p157 = por %p155, %p156
      %p158 = scmp.ne.s32.totalorder %s149, %s150
      %p159 = scmp.eq.s32.totalorder %s29, 0
      %p160 = por %p158, %p159
      %p161 = scmp.ne.s32.totalorder %s149, %s150
      %p162 = scmp.eq.s32.totalorder %s30, 1
      %p163 = por %p161, %p162
      %p165 = scmp.ne.s32.totalorder %s150, %s164
      %p166 = scmp.eq.s32.totalorder %s30, 0
      %p167 = por %p165, %p166
      %s169 = sadd.s32 %s168, 1
      %p172 = scmp.eq.s32.totalorder %s24, 1
      %p173 = scmp.ne.s32.totalorder %s168, %s170
      %p174 = scmp.eq.s32.totalorder %s24, 0
      %p175 = por %p173, %p174
      %p176 = scmp.ne.s32.totalorder %s168, %s170
      %p177 = scmp.eq.s32.totalorder %s29, 1
      %p178 = por %p176, %p177
      %p179 = scmp.ne.s32.totalorder %s170, %s171
      %p180 = scmp.eq.s32.totalorder %s29, 0
      %p181 = por %p179, %p180
      %p182 = scmp.ne.s32.totalorder %s170, %s171
      %p183 = scmp.eq.s32.totalorder %s30, 1
      %p184 = por %p182, %p183
      %p186 = scmp.ne.s32.totalorder %s171, %s185
      %p187 = scmp.eq.s32.totalorder %s30, 0
      %p188 = por %p186, %p187
      %s190 = sadd.s32 %s189, 1
      %p193 = scmp.eq.s32.totalorder %s24, 1
      %p194 = scmp.ne.s32.totalorder %s189, %s191
      %p195 = scmp.eq.s32.totalorder %s24, 0
      %p196 = por %p194, %p195
      %p197 = scmp.ne.s32.totalorder %s189, %s191
      %p198 = scmp.eq.s32.totalorder %s29, 1
      %p199 = por %p197, %p198
      %p200 = scmp.ne.s32.totalorder %s191, %s192
      %p201 = scmp.eq.s32.totalorder %s29, 0
      %p202 = por %p200, %p201
      %p203 = scmp.ne.s32.totalorder %s191, %s192
      %p204 = scmp.eq.s32.totalorder %s30, 1
      %p205 = por %p203, %p204
      %p207 = scmp.ne.s32.totalorder %s192, %s206
      %p208 = scmp.eq.s32.totalorder %s30, 0
      %p209 = por %p207, %p208
      %s211 = sadd.s32 %s210, 1
      %p214 = scmp.eq.s32.totalorder %s24, 1
      %p215 = scmp.ne.s32.totalorder %s210, %s212
      %p216 = scmp.eq.s32.totalorder %s24, 0
      %p217 = por %p215, %p216
      %p218 = scmp.ne.s32.totalorder %s210, %s212
      %p219 = scmp.eq.s32.totalorder %s29, 1
      %p220 = por %p218, %p219
      %p221 = scmp.ne.s32.totalorder %s212, %s213
      %p222 = scmp.eq.s32.totalorder %s29, 0
      %p223 = por %p221, %p222
      %p224 = scmp.ne.s32.totalorder %s212, %s213
      %p225 = scmp.eq.s32.totalorder %s30, 1
      %p226 = por %p224, %p225
      %p228 = scmp.ne.s32.totalorder %s213, %s227
      %p229 = scmp.eq.s32.totalorder %s30, 0
      %p230 = por %p228, %p229
      %s232 = sadd.s32 %s231, 1
      %p235 = scmp.eq.s32.totalorder %s24, 1
      %p236 = scmp.ne.s32.totalorder %s231, %s233
      %p237 = scmp.eq.s32.totalorder %s24, 0
      %p238 = por %p236, %p237
      %p239 = scmp.ne.s32.totalorder %s231, %s233
      %p240 = scmp.eq.s32.totalorder %s29, 1
      %p241 = por %p239, %p240
      %p242 = scmp.ne.s32.totalorder %s233, %s234
      %p243 = scmp.eq.s32.totalorder %s29, 0
      %p244 = por %p242, %p243
      %p245 = scmp.ne.s32.totalorder %s233, %s234
      %p246 = scmp.eq.s32.totalorder %s30, 1
      %p247 = por %p245, %p246
      %p249 = scmp.ne.s32.totalorder %s234, %s248
      %p250 = scmp.eq.s32.totalorder %s30, 0
      %p251 = por %p249, %p250
      %s253 = sadd.s32 %s252, 1
      %p256 = scmp.eq.s32.totalorder %s24, 1
      %p257 = scmp.ne.s32.totalorder %s252, %s254
      %p258 = scmp.eq.s32.totalorder %s24, 0
      %p259 = por %p257, %p258
      %p260 = scmp.ne.s32.totalorder %s252, %s254
      %p261 = scmp.eq.s32.totalorder %s29, 1
      %p262 = por %p260, %p261
      %p263 = scmp.ne.s32.totalorder %s254, %s255
      %p264 = scmp.eq.s32.totalorder %s29, 0
      %p265 = por %p263, %p264
      %p266 = scmp.ne.s32.totalorder %s254, %s255
      %p267 = scmp.eq.s32.totalorder %s30, 1
      %p268 = por %p266, %p267
      %p270 = scmp.ne.s32.totalorder %s255, %s269
      %p271 = scmp.eq.s32.totalorder %s30, 0
      %p272 = por %p270, %p271
      %s274 = sadd.s32 %s273, 1
      %p277 = scmp.eq.s32.totalorder %s24, 1
      %p278 = scmp.ne.s32.totalorder %s273, %s275
      %p279 = scmp.eq.s32.totalorder %s24, 0
      %p280 = por %p278, %p279
      %p281 = scmp.ne.s32.totalorder %s273, %s275
      %p282 = scmp.eq.s32.totalorder %s29, 1
      %p283 = por %p281, %p282
      %p284 = scmp.ne.s32.totalorder %s275, %s276
      %p285 = scmp.eq.s32.totalorder %s29, 0
      %p286 = por %p284, %p285
      %p287 = scmp.ne.s32.totalorder %s275, %s276
      %p288 = scmp.eq.s32.totalorder %s30, 1
      %p289 = por %p287, %p288
      %p291 = scmp.ne.s32.totalorder %s276, %s290
      %p292 = scmp.eq.s32.totalorder %s30, 0
      %p293 = por %p291, %p292
      %s295 = sadd.s32 %s294, 1
      %p298 = scmp.eq.s32.totalorder %s24, 1
      %p299 = scmp.ne.s32.totalorder %s294, %s296
      %p300 = scmp.eq.s32.totalorder %s24, 0
      %p301 = por %p299, %p300
      %p302 = scmp.ne.s32.totalorder %s294, %s296
      %p303 = scmp.eq.s32.totalorder %s29, 1
      %p304 = por %p302, %p303
      %p305 = scmp.ne.s32.totalorder %s296, %s297
      %p306 = scmp.eq.s32.totalorder %s29, 0
      %p307 = por %p305, %p306
      %p308 = scmp.ne.s32.totalorder %s296, %s297
      %p309 = scmp.eq.s32.totalorder %s30, 1
      %p310 = por %p308, %p309
      %p312 = scmp.ne.s32.totalorder %s297, %s311
      %p313 = scmp.eq.s32.totalorder %s30, 0
      %p314 = por %p312, %p313
      %s316 = sadd.s32 %s315, 1
      %p319 = scmp.eq.s32.totalorder %s24, 1
      %p320 = scmp.ne.s32.totalorder %s315, %s317
      %p321 = scmp.eq.s32.totalorder %s24, 0
      %p322 = por %p320, %p321
      %p323 = scmp.ne.s32.totalorder %s315, %s317
      %p324 = scmp.eq.s32.totalorder %s29, 1
      %p325 = por %p323, %p324
      %p326 = scmp.ne.s32.totalorder %s317, %s318
      %p327 = scmp.eq.s32.totalorder %s29, 0
      %p328 = por %p326, %p327
      %p329 = scmp.ne.s32.totalorder %s317, %s318
      %p330 = scmp.eq.s32.totalorder %s30, 1
      %p331 = por %p329, %p330
      %p333 = scmp.ne.s32.totalorder %s318, %s332
      %p334 = scmp.eq.s32.totalorder %s30, 0
      %p335 = por %p333, %p334
      %s337 = sadd.s32 %s336, 1
      %p340 = scmp.eq.s32.totalorder %s24, 1
      %p341 = scmp.ne.s32.totalorder %s336, %s338
      %p342 = scmp.eq.s32.totalorder %s24, 0
      %p343 = por %p341, %p342
      %p344 = scmp.ne.s32.totalorder %s336, %s338
      %p345 = scmp.eq.s32.totalorder %s29, 1
      %p346 = por %p344, %p345
      %p347 = scmp.ne.s32.totalorder %s338, %s339
      %p348 = scmp.eq.s32.totalorder %s29, 0
      %p349 = por %p347, %p348
      %p350 = scmp.ne.s32.totalorder %s338, %s339
      %p351 = scmp.eq.s32.totalorder %s30, 1
      %p352 = por %p350, %p351
      %p354 = scmp.ne.s32.totalorder %s339, %s353
      %p355 = scmp.eq.s32.totalorder %s30, 0
      %p356 = por %p354, %p355
      %s357 = ssub.s32 %s24, %s31
      %p358 = scmp.eq.s32.totalorder %s357, 0
      %s360 = sadd.s32 %s359, 1
      %s361 = scalar_select %p358, %s359, %s360
      %p364 = pneg %p358
      %p365 = scmp.eq.s32.totalorder %s24, 1
      %p366 = por %p364, %p365
      %p367 = scmp.ne.s32.totalorder %s359, %s362
      %p368 = scmp.eq.s32.totalorder %s24, 0
      %p369 = por %p367, %p368
      %p370 = scmp.ne.s32.totalorder %s359, %s362
      %p371 = scmp.eq.s32.totalorder %s29, 1
      %p372 = por %p370, %p371
      %p373 = scmp.ne.s32.totalorder %s362, %s363
      %p374 = scmp.eq.s32.totalorder %s29, 0
      %p375 = por %p373, %p374
      %p376 = scmp.ne.s32.totalorder %s362, %s363
      %p377 = scmp.eq.s32.totalorder %s30, 1
      %p378 = por %p376, %p377
      %p380 = scmp.ne.s32.totalorder %s363, %s379
      %p381 = scmp.eq.s32.totalorder %s30, 0
      %p382 = por %p380, %p381
      %p383 = scmp.le.s32.totalorder 1, %s24
      %p384 = scmp.lt.s32.totalorder %s24, 3
      %p385 = pnand %p383, %p384
      %p386 = pneg %p385
      // Predicated region
      $region9: #{tpu_custom_call.1} parent=5 // pred_check
        _
      $region10: #{tpu_custom_call.1} parent=5 // pred_check_branch
        %388 = sbr.rel (%p385) target = $region12
      $region11: #{tpu_custom_call.1} parent=5 // pred_region
        %s389 = ssub.s32 %s24, 1
        // Predicated region
        $region13: #{tpu_custom_call.1} parent=11 // pred_check
          %p390 = pneg %p97
        $region14: #{tpu_custom_call.1} parent=11 // pred_check_branch
          %392 = sbr.rel (%p390) target = $region16
        $region15: #{tpu_custom_call.1} parent=11 // pred_region
          _
        $region16: #{tpu_custom_call.1} parent=11 // pred_fallthru
          _
        // Predicated region
        $region17: #{tpu_custom_call.1} parent=11 // pred_check
          %p393 = pneg %p118
        $region18: #{tpu_custom_call.1} parent=11 // pred_check_branch
          %395 = sbr.rel (%p393) target = $region20
        $region19: #{tpu_custom_call.1} parent=11 // pred_region
          _
        $region20: #{tpu_custom_call.1} parent=11 // pred_fallthru
          _
        // Predicated region
        $region21: #{tpu_custom_call.1} parent=11 // pred_check
          %p396 = pneg %p139
        $region22: #{tpu_custom_call.1} parent=11 // pred_check_branch
          %398 = sbr.rel (%p396) target = $region24
        $region23: #{tpu_custom_call.1} parent=11 // pred_region
          _
        $region24: #{tpu_custom_call.1} parent=11 // pred_fallthru
          _
        // Predicated region
        $region25: #{tpu_custom_call.1} parent=11 // pred_check
          %p399 = pneg %p160
        $region26: #{tpu_custom_call.1} parent=11 // pred_check_branch
          %401 = sbr.rel (%p399) target = $region28
        $region27: #{tpu_custom_call.1} parent=11 // pred_region
          _
        $region28: #{tpu_custom_call.1} parent=11 // pred_fallthru
          _
        // Predicated region
        $region29: #{tpu_custom_call.1} parent=11 // pred_check
          %p402 = pneg %p181
        $region30: #{tpu_custom_call.1} parent=11 // pred_check_branch
          %404 = sbr.rel (%p402) target = $region32
        $region31: #{tpu_custom_call.1} parent=11 // pred_region
          _
        $region32: #{tpu_custom_call.1} parent=11 // pred_fallthru
          _
        // Predicated region
        $region33: #{tpu_custom_call.1} parent=11 // pred_check
          %p405 = pneg %p202
        $region34: #{tpu_custom_call.1} parent=11 // pred_check_branch
          %407 = sbr.rel (%p405) target = $region36
        $region35: #{tpu_custom_call.1} parent=11 // pred_region
          _
        $region36: #{tpu_custom_call.1} parent=11 // pred_fallthru
          _
        // Predicated region
        $region37: #{tpu_custom_call.1} parent=11 // pred_check
          %p408 = pneg %p223
        $region38: #{tpu_custom_call.1} parent=11 // pred_check_branch
          %410 = sbr.rel (%p408) target = $region40
        $region39: #{tpu_custom_call.1} parent=11 // pred_region
          _
        $region40: #{tpu_custom_call.1} parent=11 // pred_fallthru
          _
        // Predicated region
        $region41: #{tpu_custom_call.1} parent=11 // pred_check
          %p411 = pneg %p244
        $region42: #{tpu_custom_call.1} parent=11 // pred_check_branch
          %413 = sbr.rel (%p411) target = $region44
        $region43: #{tpu_custom_call.1} parent=11 // pred_region
          _
        $region44: #{tpu_custom_call.1} parent=11 // pred_fallthru
          _
        // Predicated region
        $region45: #{tpu_custom_call.1} parent=11 // pred_check
          %p414 = pneg %p265
        $region46: #{tpu_custom_call.1} parent=11 // pred_check_branch
          %416 = sbr.rel (%p414) target = $region48
        $region47: #{tpu_custom_call.1} parent=11 // pred_region
          _
        $region48: #{tpu_custom_call.1} parent=11 // pred_fallthru
          _
        // Predicated region
        $region49: #{tpu_custom_call.1} parent=11 // pred_check
          %p417 = pneg %p286
        $region50: #{tpu_custom_call.1} parent=11 // pred_check_branch
          %419 = sbr.rel (%p417) target = $region52
        $region51: #{tpu_custom_call.1} parent=11 // pred_region
          _
        $region52: #{tpu_custom_call.1} parent=11 // pred_fallthru
          _
        // Predicated region
        $region53: #{tpu_custom_call.1} parent=11 // pred_check
          %p420 = pneg %p307
        $region54: #{tpu_custom_call.1} parent=11 // pred_check_branch
          %422 = sbr.rel (%p420) target = $region56
        $region55: #{tpu_custom_call.1} parent=11 // pred_region
          _
        $region56: #{tpu_custom_call.1} parent=11 // pred_fallthru
          _
        // Predicated region
        $region57: #{tpu_custom_call.1} parent=11 // pred_check
          %p423 = pneg %p328
        $region58: #{tpu_custom_call.1} parent=11 // pred_check_branch
          %425 = sbr.rel (%p423) target = $region60
        $region59: #{tpu_custom_call.1} parent=11 // pred_region
          _
        $region60: #{tpu_custom_call.1} parent=11 // pred_fallthru
          _
        // Predicated region
        $region61: #{tpu_custom_call.1} parent=11 // pred_check
          %p426 = pneg %p349
        $region62: #{tpu_custom_call.1} parent=11 // pred_check_branch
          %428 = sbr.rel (%p426) target = $region64
        $region63: #{tpu_custom_call.1} parent=11 // pred_region
          _
        $region64: #{tpu_custom_call.1} parent=11 // pred_fallthru
          _
      $region12: #{tpu_custom_call.1} parent=5 // pred_fallthru
        _
      %p429 = scmp.lt.s32.totalorder %s24, 2
      // Predicated region
      $region65: #{tpu_custom_call.1} parent=5 // pred_check
        %p430 = pneg %p429
      $region66: #{tpu_custom_call.1} parent=5 // pred_check_branch
        %432 = sbr.rel (%p430) target = $region68
      $region67: #{tpu_custom_call.1} parent=5 // pred_region
        // Predicated region
        $region69: #{tpu_custom_call.1} parent=67 // pred_check
          %p433 = pneg %p44
        $region70: #{tpu_custom_call.1} parent=67 // pred_check_branch
          %435 = sbr.rel (%p433) target = $region72
        $region71: #{tpu_custom_call.1} parent=67 // pred_region
          %p436 = scmp.lt.s32.totalorder %s24, 1
          %s437 = scalar_select %p436, %s24, 1
          %s438 = smul.addr %s437, 2
          %s439 = smul.addr %s438, 8
          %s440 = scalar_lea.vmem %s0, %s439
        $region72: #{tpu_custom_call.1} parent=67 // pred_fallthru
          _
        // Predicated region
        $region73: #{tpu_custom_call.1} parent=67 // pred_check
          %p441 = pneg %p70
        $region74: #{tpu_custom_call.1} parent=67 // pred_check_branch
          %443 = sbr.rel (%p441) target = $region76
        $region75: #{tpu_custom_call.1} parent=67 // pred_region
          %p444 = scmp.lt.s32.totalorder %s24, 1
          %s445 = scalar_select %p444, %s24, 1
          %s446 = smul.addr %s445, 2
          %s447 = smul.addr %s446, 8
          %s448 = scalar_lea.vmem %s1, %s447
        $region76: #{tpu_custom_call.1} parent=67 // pred_fallthru
          _
      $region68: #{tpu_custom_call.1} parent=5 // pred_fallthru
        _
      %p449 = scmp.le.s32.totalorder 1, %s24
      %p450 = scmp.lt.s32.totalorder %s24, 3
      %p451 = pnand %p449, %p450
      %p452 = pneg %p451
      // Predicated region
      $region77: #{tpu_custom_call.1} parent=5 // pred_check
        _
      $region78: #{tpu_custom_call.1} parent=5 // pred_check_branch
        %454 = sbr.rel (%p451) target = $region80
      $region79: #{tpu_custom_call.1} parent=5 // pred_region
        %s455 = ssub.s32 %s24, 1
        %p456 = scmp.lt.s32.totalorder %s29, 1
        %s457 = scalar_select %p456, %s29, 1
        %s458 = smul.addr %s457, 2
        %s459 = smul.addr %s458, 8
        %s460 = scalar_lea.vmem %s0, %s459
        %p461 = pneg %p50
        %p462 = pneg %p47
        %p463 = scmp.lt.s32.totalorder %s29, 1
        %s464 = scalar_select %p463, %s29, 1
        %s465 = smul.addr %s464, 2
        %s466 = smul.addr %s465, 8
        %s467 = scalar_lea.vmem %s1, %s466
        %p468 = pneg %p76
        %p469 = pneg %p73
        %p470 = pneg %p97
        %p471 = pneg %p94
        %p472 = pneg %p118
        %p473 = pneg %p115
        %p474 = pneg %p139
        %p475 = pneg %p136
        %p476 = pneg %p160
        %p477 = pneg %p157
        %p478 = pneg %p181
        %p479 = pneg %p178
        %p480 = pneg %p202
        %p481 = pneg %p199
        %p482 = pneg %p223
        %p483 = pneg %p220
        %p484 = pneg %p244
        %p485 = pneg %p241
        %p486 = pneg %p265
        %p487 = pneg %p262
        %p488 = pneg %p286
        %p489 = pneg %p283
        %p490 = pneg %p307
        %p491 = pneg %p304
        %p492 = pneg %p328
        %p493 = pneg %p325
        %p494 = pneg %p349
        %p495 = pneg %p346
        %p496 = pneg %p375
        %p497 = pneg %p372
        %s498 = sand.u32 %s362, 1
        %s499 = scalar_lea.sflag [#allocation3], %s498
        %s500 = sand.u32 %s362, 1
        %s501 = smul.addr %s500, 32
        %s502 = scalar_lea.vmem [#allocation2], %s501
        %p503 = scmp.lt.s32.totalorder %s29, 1
        %s504 = scalar_select %p503, %s29, 1
        %s505 = smul.addr %s504, 2
        %s506 = smul.addr %s505, 8
        %s507 = scalar_lea.vmem %s0, %s506
        %p508 = scmp.lt.s32.totalorder %s29, 1
        %s509 = scalar_select %p508, %s29, 1
        %s510 = smul.addr %s509, 2
        %s511 = smul.addr %s510, 8
        %s512 = scalar_lea.vmem %s1, %s511
        %v514 = vld [vmem:[%s507] sm:$0xff]
        %v515 = vld [vmem:[%s507 + $0x8] sm:$0xff]
        %v516 = vld [vmem:[%s5] sm:$0xff]
        %v517 = vld [vmem:[%s6] sm:$0xff]
        %v518 = vadd.f32 %v514, %v515
        %519 = vadd.xlane.f32.xlu0 %v518
        %v520 = vpop.xlane.xlu0 %519
        %v521 = vld [vmem:[%s3] sm:$0xff]
        %vm522 = vcmask 64512
        %v524 = vsel %vm522, %v521, 0
        %526 = vmatpush.msra.mxu0 0.0
        %527 = vmatpush.msra.mxu0 0.0
        %528 = vmatpush.msra.mxu0 0.0
        %529 = vmatpush.msra.mxu0 0.0
        %530 = vmatpush.msra.mxu0 0.0
        %531 = vmatpush.msra.mxu0 0.0
        %532 = vmatpush.msra.mxu0 0.0
        %533 = vmatpush.msra.mxu0 0.0
        %534 = vmatpush.msra.mxu0 0.0
        %535 = vmatpush.msra.mxu0 0.0
        %536 = vmatpush.msra.mxu0 0.0
        %537 = vmatpush.msra.mxu0 0.0
        %538 = vmatpush.msra.mxu0 0.0
        %539 = vmatpush.msra.mxu0 0.0
        %540 = vmatpush.msra.mxu0 0.0
        %541 = vmatpush.msra.mxu0 %v520
        %542 = vmatmul.f32.gmra.mxu0 %v524
        %v543 = vpop.f32.mrf.mxu0
        %v544 = vadd.f32 0.0, %v543
        %545 = vdwg.mxu0
        %v546 = vmul.f32 %v544, 0.001953125
        %548 = vset.pattern.permute.xlu0 0
        %549 = vperm.xlu0 %548, %v546
        %v550 = vpop.permute.xlu0 %549
        %v552 = vsub.f32 %v514, %v550
        %v553 = vsub.f32 %v515, %v550
        %v554 = vmul.f32 %v552, %v552
        %v555 = vmul.f32 %v553, %v553
        %v556 = vadd.f32 %v554, %v555
        %557 = vadd.xlane.f32.xlu0 %v556
        %v558 = vpop.xlane.xlu0 %557
        %559 = vmatpush.msra.mxu0 0.0
        %560 = vmatpush.msra.mxu0 0.0
        %561 = vmatpush.msra.mxu0 0.0
        %562 = vmatpush.msra.mxu0 0.0
        %563 = vmatpush.msra.mxu0 0.0
        %564 = vmatpush.msra.mxu0 0.0
        %565 = vmatpush.msra.mxu0 0.0
        %566 = vmatpush.msra.mxu0 0.0
        %567 = vmatpush.msra.mxu0 0.0
        %568 = vmatpush.msra.mxu0 0.0
        %569 = vmatpush.msra.mxu0 0.0
        %570 = vmatpush.msra.mxu0 0.0
        %571 = vmatpush.msra.mxu0 0.0
        %572 = vmatpush.msra.mxu0 0.0
        %573 = vmatpush.msra.mxu0 0.0
        %574 = vmatpush.msra.mxu0 %v558
        %575 = vmatmul.f32.gmra.mxu0 %v524
        %v576 = vpop.f32.mrf.mxu0
        %v577 = vadd.f32 0.0, %v576
        %578 = vdwg.mxu0
        %v579 = vmul.f32 %v577, 0.001953125
        %v580 = vadd.f32 %v579, 1e-06
        %v581 = vrsqrt.pop %v580
        %v582 = vmul.f32 %v581, %v580
        %v583 = vmul.f32 %v582, %v581
        %v584 = vmul.f32 0.5, %v583
        %v585 = vsub.f32 1.5, %v584
        %v586 = vmul.f32 %v581, %v585
        %vm587 = vweird.f32 %v580
        %vm588 = vweird.f32 %v581
        %vm589 = vmor %vm587, %vm588
        %v590 = vsel %vm589, %v581, %v586
        %592 = vset.pattern.permute.xlu0 0
        %593 = vperm.xlu0 %592, %v590
        %v594 = vpop.permute.xlu0 %593
        %v596 = vmul.f32 %v552, %v594
        %v597 = vmul.f32 %v553, %v594
        %599 = vset.pattern.permute.xlu0 0
        %600 = vperm.xlu0 %599, %v516
        %v601 = vpop.permute.xlu0 %600
        %v603 = vmul.f32 %v596, %v601
        %v604 = vmul.f32 %v597, %v601
        %606 = vset.pattern.permute.xlu0 0
        %607 = vperm.xlu0 %606, %v517
        %v608 = vpop.permute.xlu0 %607
        %v610 = vadd.f32 %v603, %v608
        %v611 = vadd.f32 %v604, %v608
        %v612 = vxor.u32 %v610, 2147483648
        %v613 = vxor.u32 %v611, 2147483648
        %v614 = vmul.f32 %v612, 1.442695
        %v615 = vpow.pop %v614
        %v616 = vmul.f32 %v613, 1.442695
        %v617 = vpow.pop %v616
        %v618 = vadd.f32 %v615, 1.0
        %v619 = vadd.f32 %v617, 1.0
        %v620 = vrcp.pop %v618
        %v621 = vmul.f32 %v618, %v620
        %v622 = vsub.f32 1.0, %v621
        %v623 = vmul.f32 %v620, %v622
        %v624 = vadd.f32 %v620, %v623
        %vm625 = vweird.f32 %v618
        %vm626 = vweird.f32 %v620
        %vm627 = vmor %vm625, %vm626
        %v628 = vsel %vm627, %v620, %v624
        %v629 = vand.u32 2147483647, %v618
        %vm630 = vcmp.eq.f32.partialorder %v629, 8.507059e+37
        %v631 = vand.u32 %v618, 2147483648
        %v632 = vor.u32 1.1754944e-38, %v631
        %v633 = vsel %vm630, %v632, %v628
        %v634 = vmul.f32 1.0, %v633
        %v635 = vrcp.pop %v619
        %v636 = vmul.f32 %v619, %v635
        %v637 = vsub.f32 1.0, %v636
        %v638 = vmul.f32 %v635, %v637
        %v639 = vadd.f32 %v635, %v638
        %vm640 = vweird.f32 %v619
        %vm641 = vweird.f32 %v635
        %vm642 = vmor %vm640, %vm641
        %v643 = vsel %vm642, %v635, %v639
        %v644 = vand.u32 2147483647, %v619
        %vm645 = vcmp.eq.f32.partialorder %v644, 8.507059e+37
        %v646 = vand.u32 %v619, 2147483648
        %v647 = vor.u32 1.1754944e-38, %v646
        %v648 = vsel %vm645, %v647, %v643
        %v649 = vmul.f32 1.0, %v648
        %v650 = vmul.f32 %v610, %v634
        %v651 = vmul.f32 %v611, %v649
        %v652 = vld [vmem:[%s2] ss:$8 sm:$0x3]
        %v654 = vperm.slane %v652, 0
        %v655 = vperm.slane %v652, 1
        %656 = vrot.lane.b32.xlu0 %v654, 111
        %v657 = vpop.permute.xlu0 %656
        %658 = vrot.lane.b32.xlu0 %v655, 111
        %v659 = vpop.permute.xlu0 %658
        %vm660 = vcmask 908288
        %v661 = vsel %vm660, %v657, %v659
        %v665 = vmul.f32 %v657, 0.0
        %v666 = vmul.f32 %v650, %v661
        %v667 = vmul.f32 %v651, %v659
        %v668 = vld [vmem:[%s7] sm:$0xf]
        %v669 = vld [vmem:[%s7 + $0x4] sm:$0xf]
        %v670 = vpack.c.bf16 %v665, %v665
        %v671 = vpack.c.bf16 %v666, %v666
        %v672 = vpack.c.bf16 %v667, %v667
        %s673 = scalar_lea.vmem %s2, 1
        %v674 = vld [vmem:[%s673] ss:$8 sm:$0x3]
        %v676 = vperm.slane %v674, 0
        %v677 = vperm.slane %v674, 1
        %678 = vrot.lane.b32.xlu0 %v676, 112
        %v679 = vpop.permute.xlu0 %678
        %680 = vrot.lane.b32.xlu0 %v677, 112
        %v681 = vpop.permute.xlu0 %680
        %vm682 = vcmask 916480
        %v683 = vsel %vm682, %v679, %v681
        %v687 = vmul.f32 %v679, 0.0
        %v688 = vmul.f32 %v650, %v683
        %v689 = vmul.f32 %v651, %v681
        %s690 = scalar_lea.vmem %s7, 8
        %v691 = vld [vmem:[%s690] sm:$0xf]
        %v692 = vld [vmem:[%s690 + $0x4] sm:$0xf]
        %v693 = vpack.c.bf16 %v687, %v687
        %v694 = vpack.c.bf16 %v688, %v688
        %v695 = vpack.c.bf16 %v689, %v689
        %v698 = vunpack.c.l.b16 %v691
        %v699 = vunpack.c.l.b16 %v692
        %v700 = vpack.c.b16 %v699, %v698
        %704 = vrot.lane.b32.xlu0 %v693, 16
        %v705 = vpop.permute.xlu0 %704
        %706 = vrot.lane.b32.xlu0 %v694, 16
        %v707 = vpop.permute.xlu0 %706
        %708 = vrot.lane.b32.xlu0 %v695, 16
        %v709 = vpop.permute.xlu0 %708
        %vm710 = vcmask 130048
        %v711 = vsel %vm710, %v705, %v707
        %v712 = vsel %vm710, %v707, %v709
        %v714 = vsel %vm522, %v700, 0
        %vm716 = vcmask 1043456
        %v718 = vsel %vm716, %v711, 0
        %v721 = vsel %vm716, %v712, 0
        %723 = vmatpush.bf16.msra.mxu0 0
        %724 = vmatpush.bf16.msra.mxu0 0
        %725 = vmatpush.bf16.msra.mxu0 0
        %726 = vmatpush.bf16.msra.mxu0 0
        %727 = vmatpush.bf16.msra.mxu0 0
        %728 = vmatpush.bf16.msra.mxu0 0
        %729 = vmatpush.bf16.msra.mxu0 0
        %730 = vmatpush.bf16.msra.mxu0 %v718
        %731 = vmatmul.bf16.gmra.mxu0 %v714
        %v732 = vpop.f32.mrf.mxu0
        %v733 = vadd.f32 0.0, %v732
        %v734 = vpop.f32.mrf.mxu0
        %v735 = vadd.f32 0.0, %v734
        %736 = vdwg.mxu0
        %737 = vmatpush.bf16.msra.mxu0 0
        %738 = vmatpush.bf16.msra.mxu0 0
        %739 = vmatpush.bf16.msra.mxu0 0
        %740 = vmatpush.bf16.msra.mxu0 0
        %741 = vmatpush.bf16.msra.mxu0 0
        %742 = vmatpush.bf16.msra.mxu0 0
        %743 = vmatpush.bf16.msra.mxu0 0
        %744 = vmatpush.bf16.msra.mxu0 %v721
        %745 = vmatmul.bf16.gmra.mxu0 %v714
        %v746 = vpop.f32.mrf.mxu0
        %v747 = vadd.f32 0.0, %v746
        %v748 = vpop.f32.mrf.mxu0
        %v749 = vadd.f32 0.0, %v748
        %750 = vdwg.mxu0
        %v753 = vunpack.c.l.b16 %v668
        %v754 = vunpack.c.l.b16 %v669
        %v755 = vpack.c.b16 %v754, %v753
        %759 = vrot.lane.b32.xlu0 %v670, 17
        %v760 = vpop.permute.xlu0 %759
        %761 = vrot.lane.b32.xlu0 %v671, 17
        %v762 = vpop.permute.xlu0 %761
        %763 = vrot.lane.b32.xlu0 %v672, 17
        %v764 = vpop.permute.xlu0 %763
        %vm765 = vcmask 138240
        %v766 = vsel %vm765, %v760, %v762
        %v767 = vsel %vm765, %v762, %v764
        %v769 = vsel %vm522, %v755, 0
        %v772 = vsel %vm716, %v766, 0
        %v775 = vsel %vm716, %v767, 0
        %777 = vmatpush.bf16.msra.mxu0 0
        %778 = vmatpush.bf16.msra.mxu0 0
        %779 = vmatpush.bf16.msra.mxu0 0
        %780 = vmatpush.bf16.msra.mxu0 0
        %781 = vmatpush.bf16.msra.mxu0 0
        %782 = vmatpush.bf16.msra.mxu0 0
        %783 = vmatpush.bf16.msra.mxu0 0
        %784 = vmatpush.bf16.msra.mxu0 %v772
        %785 = vmatmul.bf16.gmra.mxu0 %v769
        %v786 = vpop.f32.mrf.mxu0
        %v787 = vadd.f32 %v733, %v786
        %v788 = vpop.f32.mrf.mxu0
        %v789 = vadd.f32 %v735, %v788
        %790 = vdwg.mxu0
        %791 = vmatpush.bf16.msra.mxu0 0
        %792 = vmatpush.bf16.msra.mxu0 0
        %793 = vmatpush.bf16.msra.mxu0 0
        %794 = vmatpush.bf16.msra.mxu0 0
        %795 = vmatpush.bf16.msra.mxu0 0
        %796 = vmatpush.bf16.msra.mxu0 0
        %797 = vmatpush.bf16.msra.mxu0 0
        %798 = vmatpush.bf16.msra.mxu0 %v775
        %799 = vmatmul.bf16.gmra.mxu0 %v769
        %v800 = vpop.f32.mrf.mxu0
        %v801 = vadd.f32 %v747, %v800
        %v802 = vpop.f32.mrf.mxu0
        %v803 = vadd.f32 %v749, %v802
        %804 = vdwg.mxu0
        %s805 = scalar_lea.vmem %s2, 2
        %v806 = vld [vmem:[%s805] ss:$8 sm:$0x3]
        %v808 = vperm.slane %v806, 0
        %v809 = vperm.slane %v806, 1
        %810 = vrot.lane.b32.xlu0 %v808, 113
        %v811 = vpop.permute.xlu0 %810
        %812 = vrot.lane.b32.xlu0 %v809, 113
        %v813 = vpop.permute.xlu0 %812
        %vm814 = vcmask 924672
        %v815 = vsel %vm814, %v811, %v813
        %v819 = vmul.f32 %v811, 0.0
        %v820 = vmul.f32 %v650, %v815
        %v821 = vmul.f32 %v651, %v813
        %s822 = scalar_lea.vmem %s7, 16
        %v823 = vld [vmem:[%s822] sm:$0xf]
        %v824 = vld [vmem:[%s822 + $0x4] sm:$0xf]
        %v825 = vpack.c.bf16 %v819, %v819
        %v826 = vpack.c.bf16 %v820, %v820
        %v827 = vpack.c.bf16 %v821, %v821
        %v830 = vunpack.c.l.b16 %v823
        %v831 = vunpack.c.l.b16 %v824
        %v832 = vpack.c.b16 %v831, %v830
        %836 = vrot.lane.b32.xlu0 %v825, 15
        %v837 = vpop.permute.xlu0 %836
        %838 = vrot.lane.b32.xlu0 %v826, 15
        %v839 = vpop.permute.xlu0 %838
        %840 = vrot.lane.b32.xlu0 %v827, 15
        %v841 = vpop.permute.xlu0 %840
        %vm842 = vcmask 121856
        %v843 = vsel %vm842, %v837, %v839
        %v844 = vsel %vm842, %v839, %v841
        %v846 = vsel %vm522, %v832, 0
        %v849 = vsel %vm716, %v843, 0
        %v852 = vsel %vm716, %v844, 0
        %854 = vmatpush.bf16.msra.mxu0 0
        %855 = vmatpush.bf16.msra.mxu0 0
        %856 = vmatpush.bf16.msra.mxu0 0
        %857 = vmatpush.bf16.msra.mxu0 0
        %858 = vmatpush.bf16.msra.mxu0 0
        %859 = vmatpush.bf16.msra.mxu0 0
        %860 = vmatpush.bf16.msra.mxu0 0
        %861 = vmatpush.bf16.msra.mxu0 %v849
        %862 = vmatmul.bf16.gmra.mxu0 %v846
        %v863 = vpop.f32.mrf.mxu0
        %v864 = vadd.f32 0.0, %v863
        %v865 = vpop.f32.mrf.mxu0
        %v866 = vadd.f32 0.0, %v865
        %867 = vdwg.mxu0
        %868 = vmatpush.bf16.msra.mxu0 0
        %869 = vmatpush.bf16.msra.mxu0 0
        %870 = vmatpush.bf16.msra.mxu0 0
        %871 = vmatpush.bf16.msra.mxu0 0
        %872 = vmatpush.bf16.msra.mxu0 0
        %873 = vmatpush.bf16.msra.mxu0 0
        %874 = vmatpush.bf16.msra.mxu0 0
        %875 = vmatpush.bf16.msra.mxu0 %v852
        %876 = vmatmul.bf16.gmra.mxu0 %v846
        %v877 = vpop.f32.mrf.mxu0
        %v878 = vadd.f32 0.0, %v877
        %v879 = vpop.f32.mrf.mxu0
        %v880 = vadd.f32 0.0, %v879
        %881 = vdwg.mxu0
        %v882 = vadd.f32 %v787, %v864
        %v883 = vadd.f32 %v801, %v878
        %v884 = vadd.f32 %v789, %v866
        %v885 = vadd.f32 %v803, %v880
        %s886 = scalar_lea.vmem %s2, 3
        %v887 = vld [vmem:[%s886] ss:$8 sm:$0x3]
        %v889 = vperm.slane %v887, 0
        %v890 = vperm.slane %v887, 1
        %891 = vrot.lane.b32.xlu0 %v889, 127
        %v892 = vpop.permute.xlu0 %891
        %893 = vrot.lane.b32.xlu0 %v890, 127
        %v894 = vpop.permute.xlu0 %893
        %vm895 = vcmask 1039360
        %v896 = vsel %vm895, %v892, %v894
        %v900 = vmul.f32 %v892, 0.0
        %v901 = vmul.f32 %v650, %v896
        %v902 = vmul.f32 %v651, %v894
        %s903 = scalar_lea.vmem %s7, 24
        %v904 = vld [vmem:[%s903] sm:$0xf]
        %v905 = vld [vmem:[%s903 + $0x4] sm:$0xf]
        %v906 = vpack.c.bf16 %v900, %v900
        %v907 = vpack.c.bf16 %v901, %v901
        %v908 = vpack.c.bf16 %v902, %v902
        %v911 = vunpack.c.l.b16 %v904
        %v912 = vunpack.c.l.b16 %v905
        %v913 = vpack.c.b16 %v912, %v911
        %917 = vrot.lane.b32.xlu0 %v906, 1
        %v918 = vpop.permute.xlu0 %917
        %919 = vrot.lane.b32.xlu0 %v907, 1
        %v920 = vpop.permute.xlu0 %919
        %921 = vrot.lane.b32.xlu0 %v908, 1
        %v922 = vpop.permute.xlu0 %921
        %vm923 = vcmask 7168
        %v924 = vsel %vm923, %v918, %v920
        %v925 = vsel %vm923, %v920, %v922
        %v927 = vsel %vm522, %v913, 0
        %v930 = vsel %vm716, %v924, 0
        %v933 = vsel %vm716, %v925, 0
        %935 = vmatpush.bf16.msra.mxu0 0
        %936 = vmatpush.bf16.msra.mxu0 0
        %937 = vmatpush.bf16.msra.mxu0 0
        %938 = vmatpush.bf16.msra.mxu0 0
        %939 = vmatpush.bf16.msra.mxu0 0
        %940 = vmatpush.bf16.msra.mxu0 0
        %941 = vmatpush.bf16.msra.mxu0 0
        %942 = vmatpush.bf16.msra.mxu0 %v930
        %943 = vmatmul.bf16.gmra.mxu0 %v927
        %v944 = vpop.f32.mrf.mxu0
        %v945 = vadd.f32 0.0, %v944
        %v946 = vpop.f32.mrf.mxu0
        %v947 = vadd.f32 0.0, %v946
        %948 = vdwg.mxu0
        %949 = vmatpush.bf16.msra.mxu0 0
        %950 = vmatpush.bf16.msra.mxu0 0
        %951 = vmatpush.bf16.msra.mxu0 0
        %952 = vmatpush.bf16.msra.mxu0 0
        %953 = vmatpush.bf16.msra.mxu0 0
        %954 = vmatpush.bf16.msra.mxu0 0
        %955 = vmatpush.bf16.msra.mxu0 0
        %956 = vmatpush.bf16.msra.mxu0 %v933
        %957 = vmatmul.bf16.gmra.mxu0 %v927
        %v958 = vpop.f32.mrf.mxu0
        %v959 = vadd.f32 0.0, %v958
        %v960 = vpop.f32.mrf.mxu0
        %v961 = vadd.f32 0.0, %v960
        %962 = vdwg.mxu0
        %v963 = vadd.f32 %v882, %v945
        %v964 = vadd.f32 %v883, %v959
        %v965 = vadd.f32 %v884, %v947
        %v966 = vadd.f32 %v885, %v961
        %s967 = scalar_lea.vmem %s7, 32
        %v968 = vld [vmem:[%s967] sm:$0xf]
        %v969 = vld [vmem:[%s967 + $0x4] sm:$0xf]
        %v970 = vpack.c.bf16 %v650, %v650
        %v971 = vpack.c.bf16 %v651, %v651
        %v974 = vunpack.c.l.b16 %v968
        %v975 = vunpack.c.l.b16 %v969
        %v976 = vpack.c.b16 %v975, %v974
        %v978 = vsel %vm522, %v976, 0
        %v981 = vsel %vm716, %v970, 0
        %v984 = vsel %vm716, %v971, 0
        %986 = vmatpush.bf16.msra.mxu0 0
        %987 = vmatpush.bf16.msra.mxu0 0
        %988 = vmatpush.bf16.msra.mxu0 0
        %989 = vmatpush.bf16.msra.mxu0 0
        %990 = vmatpush.bf16.msra.mxu0 0
        %991 = vmatpush.bf16.msra.mxu0 0
        %992 = vmatpush.bf16.msra.mxu0 0
        %993 = vmatpush.bf16.msra.mxu0 %v981
        %994 = vmatmul.bf16.gmra.mxu0 %v978
        %v995 = vpop.f32.mrf.mxu0
        %v996 = vadd.f32 0.0, %v995
        %v997 = vpop.f32.mrf.mxu0
        %v998 = vadd.f32 0.0, %v997
        %999 = vdwg.mxu0
        %1000 = vmatpush.bf16.msra.mxu0 0
        %1001 = vmatpush.bf16.msra.mxu0 0
        %1002 = vmatpush.bf16.msra.mxu0 0
        %1003 = vmatpush.bf16.msra.mxu0 0
        %1004 = vmatpush.bf16.msra.mxu0 0
        %1005 = vmatpush.bf16.msra.mxu0 0
        %1006 = vmatpush.bf16.msra.mxu0 0
        %1007 = vmatpush.bf16.msra.mxu0 %v984
        %1008 = vmatmul.bf16.gmra.mxu0 %v978
        %v1009 = vpop.f32.mrf.mxu0
        %v1010 = vadd.f32 0.0, %v1009
        %v1011 = vpop.f32.mrf.mxu0
        %v1012 = vadd.f32 0.0, %v1011
        %1013 = vdwg.mxu0
        %v1014 = vadd.f32 %v963, %v996
        %v1015 = vadd.f32 %v964, %v1010
        %v1016 = vadd.f32 %v965, %v998
        %v1017 = vadd.f32 %v966, %v1012
        %s1018 = scalar_lea.vmem %s2, 5
        %v1019 = vld [vmem:[%s1018] ss:$8 sm:$0x3]
        %v1021 = vperm.slane %v1019, 0
        %v1022 = vperm.slane %v1019, 1
        %1023 = vrot.lane.b32.xlu0 %v1021, 1
        %v1024 = vpop.permute.xlu0 %1023
        %1025 = vrot.lane.b32.xlu0 %v1022, 1
        %v1026 = vpop.permute.xlu0 %1025
        %vm1027 = vcmask 7168
        %v1028 = vsel %vm1027, %v1024, %v1026
        %v1032 = vmul.f32 %v650, %v1024
        %v1033 = vmul.f32 %v651, %v1028
        %v1034 = vmul.f32 %v1026, 0.0
        %s1035 = scalar_lea.vmem %s7, 40
        %v1036 = vld [vmem:[%s1035] sm:$0xf]
        %v1037 = vld [vmem:[%s1035 + $0x4] sm:$0xf]
        %v1038 = vpack.c.bf16 %v1032, %v1032
        %v1039 = vpack.c.bf16 %v1033, %v1033
        %v1040 = vpack.c.bf16 %v1034, %v1034
        %v1043 = vunpack.c.l.b16 %v1036
        %v1044 = vunpack.c.l.b16 %v1037
        %v1045 = vpack.c.b16 %v1044, %v1043
        %1049 = vrot.lane.b32.xlu0 %v1038, 127
        %v1050 = vpop.permute.xlu0 %1049
        %1051 = vrot.lane.b32.xlu0 %v1039, 127
        %v1052 = vpop.permute.xlu0 %1051
        %1053 = vrot.lane.b32.xlu0 %v1040, 127
        %v1054 = vpop.permute.xlu0 %1053
        %vm1055 = vcmask 1039360
        %v1056 = vsel %vm1055, %v1050, %v1052
        %v1057 = vsel %vm1055, %v1052, %v1054
        %v1059 = vsel %vm522, %v1045, 0
        %v1062 = vsel %vm716, %v1056, 0
        %v1065 = vsel %vm716, %v1057, 0
        %1067 = vmatpush.bf16.msra.mxu0 0
        %1068 = vmatpush.bf16.msra.mxu0 0
        %1069 = vmatpush.bf16.msra.mxu0 0
        %1070 = vmatpush.bf16.msra.mxu0 0
        %1071 = vmatpush.bf16.msra.mxu0 0
        %1072 = vmatpush.bf16.msra.mxu0 0
        %1073 = vmatpush.bf16.msra.mxu0 0
        %1074 = vmatpush.bf16.msra.mxu0 %v1062
        %1075 = vmatmul.bf16.gmra.mxu0 %v1059
        %v1076 = vpop.f32.mrf.mxu0
        %v1077 = vadd.f32 0.0, %v1076
        %v1078 = vpop.f32.mrf.mxu0
        %v1079 = vadd.f32 0.0, %v1078
        %1080 = vdwg.mxu0
        %1081 = vmatpush.bf16.msra.mxu0 0
        %1082 = vmatpush.bf16.msra.mxu0 0
        %1083 = vmatpush.bf16.msra.mxu0 0
        %1084 = vmatpush.bf16.msra.mxu0 0
        %1085 = vmatpush.bf16.msra.mxu0 0
        %1086 = vmatpush.bf16.msra.mxu0 0
        %1087 = vmatpush.bf16.msra.mxu0 0
        %1088 = vmatpush.bf16.msra.mxu0 %v1065
        %1089 = vmatmul.bf16.gmra.mxu0 %v1059
        %v1090 = vpop.f32.mrf.mxu0
        %v1091 = vadd.f32 0.0, %v1090
        %v1092 = vpop.f32.mrf.mxu0
        %v1093 = vadd.f32 0.0, %v1092
        %1094 = vdwg.mxu0
        %v1095 = vadd.f32 %v1014, %v1077
        %v1096 = vadd.f32 %v1015, %v1091
        %v1097 = vadd.f32 %v1016, %v1079
        %v1098 = vadd.f32 %v1017, %v1093
        %s1099 = scalar_lea.vmem %s2, 6
        %v1100 = vld [vmem:[%s1099] ss:$8 sm:$0x3]
        %v1102 = vperm.slane %v1100, 0
        %v1103 = vperm.slane %v1100, 1
        %1104 = vrot.lane.b32.xlu0 %v1102, 15
        %v1105 = vpop.permute.xlu0 %1104
        %1106 = vrot.lane.b32.xlu0 %v1103, 15
        %v1107 = vpop.permute.xlu0 %1106
        %vm1108 = vcmask 121856
        %v1109 = vsel %vm1108, %v1105, %v1107
        %v1113 = vmul.f32 %v650, %v1105
        %v1114 = vmul.f32 %v651, %v1109
        %v1115 = vmul.f32 %v1107, 0.0
        %s1116 = scalar_lea.vmem %s7, 48
        %v1117 = vld [vmem:[%s1116] sm:$0xf]
        %v1118 = vld [vmem:[%s1116 + $0x4] sm:$0xf]
        %v1119 = vpack.c.bf16 %v1113, %v1113
        %v1120 = vpack.c.bf16 %v1114, %v1114
        %v1121 = vpack.c.bf16 %v1115, %v1115
        %v1124 = vunpack.c.l.b16 %v1117
        %v1125 = vunpack.c.l.b16 %v1118
        %v1126 = vpack.c.b16 %v1125, %v1124
        %1130 = vrot.lane.b32.xlu0 %v1119, 113
        %v1131 = vpop.permute.xlu0 %1130
        %1132 = vrot.lane.b32.xlu0 %v1120, 113
        %v1133 = vpop.permute.xlu0 %1132
        %1134 = vrot.lane.b32.xlu0 %v1121, 113
        %v1135 = vpop.permute.xlu0 %1134
        %vm1136 = vcmask 924672
        %v1137 = vsel %vm1136, %v1131, %v1133
        %v1138 = vsel %vm1136, %v1133, %v1135
        %v1140 = vsel %vm522, %v1126, 0
        %v1143 = vsel %vm716, %v1137, 0
        %v1146 = vsel %vm716, %v1138, 0
        %1148 = vmatpush.bf16.msra.mxu0 0
        %1149 = vmatpush.bf16.msra.mxu0 0
        %1150 = vmatpush.bf16.msra.mxu0 0
        %1151 = vmatpush.bf16.msra.mxu0 0
        %1152 = vmatpush.bf16.msra.mxu0 0
        %1153 = vmatpush.bf16.msra.mxu0 0
        %1154 = vmatpush.bf16.msra.mxu0 0
        %1155 = vmatpush.bf16.msra.mxu0 %v1143
        %1156 = vmatmul.bf16.gmra.mxu0 %v1140
        %v1157 = vpop.f32.mrf.mxu0
        %v1158 = vadd.f32 0.0, %v1157
        %v1159 = vpop.f32.mrf.mxu0
        %v1160 = vadd.f32 0.0, %v1159
        %1161 = vdwg.mxu0
        %1162 = vmatpush.bf16.msra.mxu0 0
        %1163 = vmatpush.bf16.msra.mxu0 0
        %1164 = vmatpush.bf16.msra.mxu0 0
        %1165 = vmatpush.bf16.msra.mxu0 0
        %1166 = vmatpush.bf16.msra.mxu0 0
        %1167 = vmatpush.bf16.msra.mxu0 0
        %1168 = vmatpush.bf16.msra.mxu0 0
        %1169 = vmatpush.bf16.msra.mxu0 %v1146
        %1170 = vmatmul.bf16.gmra.mxu0 %v1140
        %v1171 = vpop.f32.mrf.mxu0
        %v1172 = vadd.f32 0.0, %v1171
        %v1173 = vpop.f32.mrf.mxu0
        %v1174 = vadd.f32 0.0, %v1173
        %1175 = vdwg.mxu0
        %v1176 = vadd.f32 %v1095, %v1158
        %v1177 = vadd.f32 %v1096, %v1172
        %v1178 = vadd.f32 %v1097, %v1160
        %v1179 = vadd.f32 %v1098, %v1174
        %s1180 = scalar_lea.vmem %s2, 7
        %v1181 = vld [vmem:[%s1180] ss:$8 sm:$0x3]
        %v1183 = vperm.slane %v1181, 0
        %v1184 = vperm.slane %v1181, 1
        %1185 = vrot.lane.b32.xlu0 %v1183, 16
        %v1186 = vpop.permute.xlu0 %1185
        %1187 = vrot.lane.b32.xlu0 %v1184, 16
        %v1188 = vpop.permute.xlu0 %1187
        %vm1189 = vcmask 130048
        %v1190 = vsel %vm1189, %v1186, %v1188
        %v1194 = vmul.f32 %v650, %v1186
        %v1195 = vmul.f32 %v651, %v1190
        %v1196 = vmul.f32 %v1188, 0.0
        %s1197 = scalar_lea.vmem %s7, 56
        %v1198 = vld [vmem:[%s1197] sm:$0xf]
        %v1199 = vld [vmem:[%s1197 + $0x4] sm:$0xf]
        %v1200 = vpack.c.bf16 %v1194, %v1194
        %v1201 = vpack.c.bf16 %v1195, %v1195
        %v1202 = vpack.c.bf16 %v1196, %v1196
        %v1205 = vunpack.c.l.b16 %v1198
        %v1206 = vunpack.c.l.b16 %v1199
        %v1207 = vpack.c.b16 %v1206, %v1205
        %1211 = vrot.lane.b32.xlu0 %v1200, 112
        %v1212 = vpop.permute.xlu0 %1211
        %1213 = vrot.lane.b32.xlu0 %v1201, 112
        %v1214 = vpop.permute.xlu0 %1213
        %1215 = vrot.lane.b32.xlu0 %v1202, 112
        %v1216 = vpop.permute.xlu0 %1215
        %vm1217 = vcmask 916480
        %v1218 = vsel %vm1217, %v1212, %v1214
        %v1219 = vsel %vm1217, %v1214, %v1216
        %v1221 = vsel %vm522, %v1207, 0
        %v1224 = vsel %vm716, %v1218, 0
        %v1227 = vsel %vm716, %v1219, 0
        %1229 = vmatpush.bf16.msra.mxu0 0
        %1230 = vmatpush.bf16.msra.mxu0 0
        %1231 = vmatpush.bf16.msra.mxu0 0
        %1232 = vmatpush.bf16.msra.mxu0 0
        %1233 = vmatpush.bf16.msra.mxu0 0
        %1234 = vmatpush.bf16.msra.mxu0 0
        %1235 = vmatpush.bf16.msra.mxu0 0
        %1236 = vmatpush.bf16.msra.mxu0 %v1224
        %1237 = vmatmul.bf16.gmra.mxu0 %v1221
        %v1238 = vpop.f32.mrf.mxu0
        %v1239 = vadd.f32 0.0, %v1238
        %v1240 = vpop.f32.mrf.mxu0
        %v1241 = vadd.f32 0.0, %v1240
        %1242 = vdwg.mxu0
        %1243 = vmatpush.bf16.msra.mxu0 0
        %1244 = vmatpush.bf16.msra.mxu0 0
        %1245 = vmatpush.bf16.msra.mxu0 0
        %1246 = vmatpush.bf16.msra.mxu0 0
        %1247 = vmatpush.bf16.msra.mxu0 0
        %1248 = vmatpush.bf16.msra.mxu0 0
        %1249 = vmatpush.bf16.msra.mxu0 0
        %1250 = vmatpush.bf16.msra.mxu0 %v1227
        %1251 = vmatmul.bf16.gmra.mxu0 %v1221
        %v1252 = vpop.f32.mrf.mxu0
        %v1253 = vadd.f32 0.0, %v1252
        %v1254 = vpop.f32.mrf.mxu0
        %v1255 = vadd.f32 0.0, %v1254
        %1256 = vdwg.mxu0
        %v1257 = vadd.f32 %v1176, %v1239
        %v1258 = vadd.f32 %v1177, %v1253
        %v1259 = vadd.f32 %v1178, %v1241
        %v1260 = vadd.f32 %v1179, %v1255
        %s1261 = scalar_lea.vmem %s2, 16
        %v1262 = vld [vmem:[%s1261] ss:$8 sm:$0x3]
        %v1264 = vperm.slane %v1262, 0
        %v1265 = vperm.slane %v1262, 1
        %1266 = vrot.lane.b32.xlu0 %v1264, 17
        %v1267 = vpop.permute.xlu0 %1266
        %1268 = vrot.lane.b32.xlu0 %v1265, 17
        %v1269 = vpop.permute.xlu0 %1268
        %vm1270 = vcmask 138240
        %v1271 = vsel %vm1270, %v1267, %v1269
        %v1275 = vmul.f32 %v650, %v1267
        %v1276 = vmul.f32 %v651, %v1271
        %v1277 = vmul.f32 %v1269, 0.0
        %s1278 = scalar_lea.vmem %s7, 64
        %v1279 = vld [vmem:[%s1278] sm:$0xf]
        %v1280 = vld [vmem:[%s1278 + $0x4] sm:$0xf]
        %v1281 = vpack.c.bf16 %v1275, %v1275
        %v1282 = vpack.c.bf16 %v1276, %v1276
        %v1283 = vpack.c.bf16 %v1277, %v1277
        %v1286 = vunpack.c.l.b16 %v1279
        %v1287 = vunpack.c.l.b16 %v1280
        %v1288 = vpack.c.b16 %v1287, %v1286
        %1292 = vrot.lane.b32.xlu0 %v1281, 111
        %v1293 = vpop.permute.xlu0 %1292
        %1294 = vrot.lane.b32.xlu0 %v1282, 111
        %v1295 = vpop.permute.xlu0 %1294
        %1296 = vrot.lane.b32.xlu0 %v1283, 111
        %v1297 = vpop.permute.xlu0 %1296
        %vm1298 = vcmask 908288
        %v1299 = vsel %vm1298, %v1293, %v1295
        %v1300 = vsel %vm1298, %v1295, %v1297
        %v1302 = vsel %vm522, %v1288, 0
        %v1305 = vsel %vm716, %v1299, 0
        %v1308 = vsel %vm716, %v1300, 0
        %1310 = vmatpush.bf16.msra.mxu0 0
        %1311 = vmatpush.bf16.msra.mxu0 0
        %1312 = vmatpush.bf16.msra.mxu0 0
        %1313 = vmatpush.bf16.msra.mxu0 0
        %1314 = vmatpush.bf16.msra.mxu0 0
        %1315 = vmatpush.bf16.msra.mxu0 0
        %1316 = vmatpush.bf16.msra.mxu0 0
        %1317 = vmatpush.bf16.msra.mxu0 %v1305
        %1318 = vmatmul.bf16.gmra.mxu0 %v1302
        %v1319 = vpop.f32.mrf.mxu0
        %v1320 = vadd.f32 0.0, %v1319
        %v1321 = vpop.f32.mrf.mxu0
        %v1322 = vadd.f32 0.0, %v1321
        %1323 = vdwg.mxu0
        %1324 = vmatpush.bf16.msra.mxu0 0
        %1325 = vmatpush.bf16.msra.mxu0 0
        %1326 = vmatpush.bf16.msra.mxu0 0
        %1327 = vmatpush.bf16.msra.mxu0 0
        %1328 = vmatpush.bf16.msra.mxu0 0
        %1329 = vmatpush.bf16.msra.mxu0 0
        %1330 = vmatpush.bf16.msra.mxu0 0
        %1331 = vmatpush.bf16.msra.mxu0 %v1308
        %1332 = vmatmul.bf16.gmra.mxu0 %v1302
        %v1333 = vpop.f32.mrf.mxu0
        %v1334 = vadd.f32 0.0, %v1333
        %v1335 = vpop.f32.mrf.mxu0
        %v1336 = vadd.f32 0.0, %v1335
        %1337 = vdwg.mxu0
        %v1338 = vadd.f32 %v1257, %v1320
        %v1339 = vadd.f32 %v1258, %v1334
        %v1340 = vadd.f32 %v1259, %v1322
        %v1341 = vadd.f32 %v1260, %v1336
        %v1342 = vld [vmem:[%s8] sm:$0xff]
        %v1343 = vld [vmem:[%s8 + $0x8] sm:$0xff]
        %1345 = vset.pattern.permute.xlu0 0
        %1346 = vperm.xlu0 %1345, %v1342
        %v1347 = vpop.permute.xlu0 %1346
        %1350 = vset.pattern.permute.xlu0 0
        %1351 = vperm.xlu0 %1350, %v1343
        %v1352 = vpop.permute.xlu0 %1351
        %v1354 = vadd.f32 %v1338, %v1347
        %v1355 = vadd.f32 %v1339, %v1347
        %v1356 = vadd.f32 %v1340, %v1352
        %v1357 = vadd.f32 %v1341, %v1352
        %v1358 = vld [vmem:[%s512] sm:$0xff]
        %v1359 = vld [vmem:[%s512 + $0x8] sm:$0xff]
        %1361 = vset.pattern.permute.xlu0 0
        %1362 = vperm.xlu0 %1361, %v1358
        %v1363 = vpop.permute.xlu0 %1362
        %1366 = vset.pattern.permute.xlu0 0
        %1367 = vperm.xlu0 %1366, %v1359
        %v1368 = vpop.permute.xlu0 %1367
        %v1370 = vadd.f32 %v1354, %v1363
        %v1371 = vadd.f32 %v1355, %v1363
        %v1372 = vadd.f32 %v1356, %v1368
        %v1373 = vadd.f32 %v1357, %v1368
        %v1374 = vld [vmem:[%s9] sm:$0xff]
        %v1375 = vld [vmem:[%s9 + $0x8] sm:$0xff]
        %v1376 = vld [vmem:[%s10] sm:$0xff]
        %v1377 = vld [vmem:[%s10 + $0x8] sm:$0xff]
        %v1378 = vadd.f32 %v1370, %v1371
        %1379 = vadd.xlane.f32.xlu0 %v1378
        %v1380 = vpop.xlane.xlu0 %1379
        %v1381 = vadd.f32 %v1372, %v1373
        %1382 = vadd.xlane.f32.xlu0 %v1381
        %v1383 = vpop.xlane.xlu0 %1382
        %v1384 = vld [vmem:[%s4] sm:$0xff]
        %v1385 = vld [vmem:[%s4 + $0x8] sm:$0xff]
        %v1387 = vsel %vm1189, %v1384, 0
        %v1390 = vsel %vm1189, %v1385, 0
        %1392 = vmatpush.msra.mxu0 0.0
        %1393 = vmatpush.msra.mxu0 0.0
        %1394 = vmatpush.msra.mxu0 0.0
        %1395 = vmatpush.msra.mxu0 0.0
        %1396 = vmatpush.msra.mxu0 0.0
        %1397 = vmatpush.msra.mxu0 0.0
        %1398 = vmatpush.msra.mxu0 0.0
        %1399 = vmatpush.msra.mxu0 0.0
        %1400 = vmatpush.msra.mxu0 0.0
        %1401 = vmatpush.msra.mxu0 0.0
        %1402 = vmatpush.msra.mxu0 0.0
        %1403 = vmatpush.msra.mxu0 0.0
        %1404 = vmatpush.msra.mxu0 0.0
        %1405 = vmatpush.msra.mxu0 0.0
        %1406 = vmatpush.msra.mxu0 %v1383
        %1407 = vmatpush.msra.mxu0 %v1380
        %1408 = vmatmul.f32.gmra.mxu0 %v1387
        %v1409 = vpop.f32.mrf.mxu0
        %v1410 = vadd.f32 0.0, %v1409
        %1411 = vmatmul.f32.gmra.mxu0 %v1390
        %v1412 = vpop.f32.mrf.mxu0
        %v1413 = vadd.f32 0.0, %v1412
        %1414 = vdwg.mxu0
        %v1415 = vmul.f32 %v1410, 0.0009765625
        %v1416 = vmul.f32 %v1413, 0.0009765625
        %1418 = vset.pattern.permute.xlu0 0
        %1419 = vperm.xlu0 %1418, %v1415
        %v1420 = vpop.permute.xlu0 %1419
        %1423 = vset.pattern.permute.xlu0 0
        %1424 = vperm.xlu0 %1423, %v1416
        %v1425 = vpop.permute.xlu0 %1424
        %v1427 = vsub.f32 %v1370, %v1420
        %v1428 = vsub.f32 %v1371, %v1420
        %v1429 = vsub.f32 %v1372, %v1425
        %v1430 = vsub.f32 %v1373, %v1425
        %v1431 = vmul.f32 %v1427, %v1427
        %v1432 = vmul.f32 %v1428, %v1428
        %v1433 = vmul.f32 %v1429, %v1429
        %v1434 = vmul.f32 %v1430, %v1430
        %v1435 = vadd.f32 %v1431, %v1432
        %1436 = vadd.xlane.f32.xlu0 %v1435
        %v1437 = vpop.xlane.xlu0 %1436
        %v1438 = vadd.f32 %v1433, %v1434
        %1439 = vadd.xlane.f32.xlu0 %v1438
        %v1440 = vpop.xlane.xlu0 %1439
        %1441 = vmatpush.msra.mxu0 0.0
        %1442 = vmatpush.msra.mxu0 0.0
        %1443 = vmatpush.msra.mxu0 0.0
        %1444 = vmatpush.msra.mxu0 0.0
        %1445 = vmatpush.msra.mxu0 0.0
        %1446 = vmatpush.msra.mxu0 0.0
        %1447 = vmatpush.msra.mxu0 0.0
        %1448 = vmatpush.msra.mxu0 0.0
        %1449 = vmatpush.msra.mxu0 0.0
        %1450 = vmatpush.msra.mxu0 0.0
        %1451 = vmatpush.msra.mxu0 0.0
        %1452 = vmatpush.msra.mxu0 0.0
        %1453 = vmatpush.msra.mxu0 0.0
        %1454 = vmatpush.msra.mxu0 0.0
        %1455 = vmatpush.msra.mxu0 %v1440
        %1456 = vmatpush.msra.mxu0 %v1437
        %1457 = vmatmul.f32.gmra.mxu0 %v1387
        %v1458 = vpop.f32.mrf.mxu0
        %v1459 = vadd.f32 0.0, %v1458
        %1460 = vmatmul.f32.gmra.mxu0 %v1390
        %v1461 = vpop.f32.mrf.mxu0
        %v1462 = vadd.f32 0.0, %v1461
        %1463 = vdwg.mxu0
        %v1464 = vmul.f32 %v1459, 0.0009765625
        %v1465 = vmul.f32 %v1462, 0.0009765625
        %v1466 = vadd.f32 %v1464, 1e-06
        %v1467 = vadd.f32 %v1465, 1e-06
        %v1468 = vrsqrt.pop %v1466
        %v1469 = vmul.f32 %v1468, %v1466
        %v1470 = vmul.f32 %v1469, %v1468
        %v1471 = vmul.f32 0.5, %v1470
        %v1472 = vsub.f32 1.5, %v1471
        %v1473 = vmul.f32 %v1468, %v1472
        %vm1474 = vweird.f32 %v1466
        %vm1475 = vweird.f32 %v1468
        %vm1476 = vmor %vm1474, %vm1475
        %v1477 = vsel %vm1476, %v1468, %v1473
        %v1478 = vrsqrt.pop %v1467
        %v1479 = vmul.f32 %v1478, %v1467
        %v1480 = vmul.f32 %v1479, %v1478
        %v1481 = vmul.f32 0.5, %v1480
        %v1482 = vsub.f32 1.5, %v1481
        %v1483 = vmul.f32 %v1478, %v1482
        %vm1484 = vweird.f32 %v1467
        %vm1485 = vweird.f32 %v1478
        %vm1486 = vmor %vm1484, %vm1485
        %v1487 = vsel %vm1486, %v1478, %v1483
        %1489 = vset.pattern.permute.xlu0 0
        %1490 = vperm.xlu0 %1489, %v1477
        %v1491 = vpop.permute.xlu0 %1490
        %1494 = vset.pattern.permute.xlu0 0
        %1495 = vperm.xlu0 %1494, %v1487
        %v1496 = vpop.permute.xlu0 %1495
        %v1498 = vmul.f32 %v1427, %v1491
        %v1499 = vmul.f32 %v1428, %v1491
        %v1500 = vmul.f32 %v1429, %v1496
        %v1501 = vmul.f32 %v1430, %v1496
        %1503 = vset.pattern.permute.xlu0 0
        %1504 = vperm.xlu0 %1503, %v1374
        %v1505 = vpop.permute.xlu0 %1504
        %1508 = vset.pattern.permute.xlu0 0
        %1509 = vperm.xlu0 %1508, %v1375
        %v1510 = vpop.permute.xlu0 %1509
        %v1512 = vmul.f32 %v1498, %v1505
        %v1513 = vmul.f32 %v1499, %v1505
        %v1514 = vmul.f32 %v1500, %v1510
        %v1515 = vmul.f32 %v1501, %v1510
        %1517 = vset.pattern.permute.xlu0 0
        %1518 = vperm.xlu0 %1517, %v1376
        %v1519 = vpop.permute.xlu0 %1518
        %1522 = vset.pattern.permute.xlu0 0
        %1523 = vperm.xlu0 %1522, %v1377
        %v1524 = vpop.permute.xlu0 %1523
        %v1526 = vadd.f32 %v1512, %v1519
        %v1527 = vadd.f32 %v1513, %v1519
        %v1528 = vadd.f32 %v1514, %v1524
        %v1529 = vadd.f32 %v1515, %v1524
        %v1530 = vxor.u32 %v1526, 2147483648
        %v1531 = vxor.u32 %v1527, 2147483648
        %v1532 = vxor.u32 %v1528, 2147483648
        %v1533 = vxor.u32 %v1529, 2147483648
        %v1534 = vmul.f32 %v1530, 1.442695
        %v1535 = vpow.pop %v1534
        %v1536 = vmul.f32 %v1531, 1.442695
        %v1537 = vpow.pop %v1536
        %v1538 = vmul.f32 %v1532, 1.442695
        %v1539 = vpow.pop %v1538
        %v1540 = vmul.f32 %v1533, 1.442695
        %v1541 = vpow.pop %v1540
        %v1542 = vadd.f32 %v1535, 1.0
        %v1543 = vadd.f32 %v1537, 1.0
        %v1544 = vadd.f32 %v1539, 1.0
        %v1545 = vadd.f32 %v1541, 1.0
        %v1546 = vrcp.pop %v1542
        %v1547 = vmul.f32 %v1542, %v1546
        %v1548 = vsub.f32 1.0, %v1547
        %v1549 = vmul.f32 %v1546, %v1548
        %v1550 = vadd.f32 %v1546, %v1549
        %vm1551 = vweird.f32 %v1542
        %vm1552 = vweird.f32 %v1546
        %vm1553 = vmor %vm1551, %vm1552
        %v1554 = vsel %vm1553, %v1546, %v1550
        %v1555 = vand.u32 2147483647, %v1542
        %vm1556 = vcmp.eq.f32.partialorder %v1555, 8.507059e+37
        %v1557 = vand.u32 %v1542, 2147483648
        %v1558 = vor.u32 1.1754944e-38, %v1557
        %v1559 = vsel %vm1556, %v1558, %v1554
        %v1560 = vmul.f32 1.0, %v1559
        %v1561 = vrcp.pop %v1543
        %v1562 = vmul.f32 %v1543, %v1561
        %v1563 = vsub.f32 1.0, %v1562
        %v1564 = vmul.f32 %v1561, %v1563
        %v1565 = vadd.f32 %v1561, %v1564
        %vm1566 = vweird.f32 %v1543
        %vm1567 = vweird.f32 %v1561
        %vm1568 = vmor %vm1566, %vm1567
        %v1569 = vsel %vm1568, %v1561, %v1565
        %v1570 = vand.u32 2147483647, %v1543
        %vm1571 = vcmp.eq.f32.partialorder %v1570, 8.507059e+37
        %v1572 = vand.u32 %v1543, 2147483648
        %v1573 = vor.u32 1.1754944e-38, %v1572
        %v1574 = vsel %vm1571, %v1573, %v1569
        %v1575 = vmul.f32 1.0, %v1574
        %v1576 = vrcp.pop %v1544
        %v1577 = vmul.f32 %v1544, %v1576
        %v1578 = vsub.f32 1.0, %v1577
        %v1579 = vmul.f32 %v1576, %v1578
        %v1580 = vadd.f32 %v1576, %v1579
        %vm1581 = vweird.f32 %v1544
        %vm1582 = vweird.f32 %v1576
        %vm1583 = vmor %vm1581, %vm1582
        %v1584 = vsel %vm1583, %v1576, %v1580
        %v1585 = vand.u32 2147483647, %v1544
        %vm1586 = vcmp.eq.f32.partialorder %v1585, 8.507059e+37
        %v1587 = vand.u32 %v1544, 2147483648
        %v1588 = vor.u32 1.1754944e-38, %v1587
        %v1589 = vsel %vm1586, %v1588, %v1584
        %v1590 = vmul.f32 1.0, %v1589
        %v1591 = vrcp.pop %v1545
        %v1592 = vmul.f32 %v1545, %v1591
        %v1593 = vsub.f32 1.0, %v1592
        %v1594 = vmul.f32 %v1591, %v1593
        %v1595 = vadd.f32 %v1591, %v1594
        %vm1596 = vweird.f32 %v1545
        %vm1597 = vweird.f32 %v1591
        %vm1598 = vmor %vm1596, %vm1597
        %v1599 = vsel %vm1598, %v1591, %v1595
        %v1600 = vand.u32 2147483647, %v1545
        %vm1601 = vcmp.eq.f32.partialorder %v1600, 8.507059e+37
        %v1602 = vand.u32 %v1545, 2147483648
        %v1603 = vor.u32 1.1754944e-38, %v1602
        %v1604 = vsel %vm1601, %v1603, %v1599
        %v1605 = vmul.f32 1.0, %v1604
        %v1606 = vmul.f32 %v1526, %v1560
        %v1607 = vmul.f32 %v1527, %v1575
        %v1608 = vmul.f32 %v1528, %v1590
        %v1609 = vmul.f32 %v1529, %v1605
        %v1610 = vmul.f32 %v1606, %v661
        %v1611 = vmul.f32 %v1607, %v659
        %v1612 = vmul.f32 %v1608, %v661
        %v1613 = vmul.f32 %v1609, %v659
        %v1614 = vld [vmem:[%s11] sm:$0xf]
        %v1615 = vld [vmem:[%s11 + $0x4] sm:$0xf]
        %v1616 = vpack.c.bf16 %v1612, %v1610
        %v1617 = vpack.c.bf16 %v1613, %v1611
        %v1618 = vmul.f32 %v1606, %v683
        %v1619 = vmul.f32 %v1607, %v681
        %v1620 = vmul.f32 %v1608, %v683
        %v1621 = vmul.f32 %v1609, %v681
        %s1622 = scalar_lea.vmem %s11, 8
        %v1623 = vld [vmem:[%s1622] sm:$0xf]
        %v1624 = vld [vmem:[%s1622 + $0x4] sm:$0xf]
        %v1625 = vpack.c.bf16 %v1620, %v1618
        %v1626 = vpack.c.bf16 %v1621, %v1619
        %v1629 = vunpack.c.l.b16 %v1623
        %v1630 = vunpack.c.l.b16 %v1624
        %v1631 = vpack.c.b16 %v1630, %v1629
        %1634 = vrot.lane.b32.xlu0 %v1625, 16
        %v1635 = vpop.permute.xlu0 %1634
        %1636 = vrot.lane.b32.xlu0 %v1626, 16
        %v1637 = vpop.permute.xlu0 %1636
        %v1638 = vsel %vm710, %v705, %v1635
        %v1639 = vsel %vm710, %v1635, %v1637
        %v1643 = vsel %vm1189, %v1631, 0
        %1645 = vmatpush.bf16.msra.mxu0 0
        %1646 = vmatpush.bf16.msra.mxu0 0
        %1647 = vmatpush.bf16.msra.mxu0 0
        %1648 = vmatpush.bf16.msra.mxu0 0
        %1649 = vmatpush.bf16.msra.mxu0 0
        %1650 = vmatpush.bf16.msra.mxu0 0
        %1651 = vmatpush.bf16.msra.mxu0 0
        %1652 = vmatpush.bf16.msra.mxu0 %v1638
        %1653 = vmatmul.bf16.gmra.mxu0 %v1643
        %v1654 = vpop.f32.mrf.mxu0
        %v1655 = vadd.f32 0.0, %v1654
        %v1656 = vpop.f32.mrf.mxu0
        %v1657 = vadd.f32 0.0, %v1656
        %1658 = vdwg.mxu0
        %1659 = vmatpush.bf16.msra.mxu0 0
        %1660 = vmatpush.bf16.msra.mxu0 0
        %1661 = vmatpush.bf16.msra.mxu0 0
        %1662 = vmatpush.bf16.msra.mxu0 0
        %1663 = vmatpush.bf16.msra.mxu0 0
        %1664 = vmatpush.bf16.msra.mxu0 0
        %1665 = vmatpush.bf16.msra.mxu0 0
        %1666 = vmatpush.bf16.msra.mxu0 %v1639
        %1667 = vmatmul.bf16.gmra.mxu0 %v1643
        %v1668 = vpop.f32.mrf.mxu0
        %v1669 = vadd.f32 0.0, %v1668
        %v1670 = vpop.f32.mrf.mxu0
        %v1671 = vadd.f32 0.0, %v1670
        %1672 = vdwg.mxu0
        %v1675 = vunpack.c.l.b16 %v1614
        %v1676 = vunpack.c.l.b16 %v1615
        %v1677 = vpack.c.b16 %v1676, %v1675
        %1680 = vrot.lane.b32.xlu0 %v1616, 17
        %v1681 = vpop.permute.xlu0 %1680
        %1682 = vrot.lane.b32.xlu0 %v1617, 17
        %v1683 = vpop.permute.xlu0 %1682
        %v1684 = vsel %vm765, %v760, %v1681
        %v1685 = vsel %vm765, %v1681, %v1683
        %v1689 = vsel %vm1189, %v1677, 0
        %1691 = vmatpush.bf16.msra.mxu0 0
        %1692 = vmatpush.bf16.msra.mxu0 0
        %1693 = vmatpush.bf16.msra.mxu0 0
        %1694 = vmatpush.bf16.msra.mxu0 0
        %1695 = vmatpush.bf16.msra.mxu0 0
        %1696 = vmatpush.bf16.msra.mxu0 0
        %1697 = vmatpush.bf16.msra.mxu0 0
        %1698 = vmatpush.bf16.msra.mxu0 %v1684
        %1699 = vmatmul.bf16.gmra.mxu0 %v1689
        %v1700 = vpop.f32.mrf.mxu0
        %v1701 = vadd.f32 %v1655, %v1700
        %v1702 = vpop.f32.mrf.mxu0
        %v1703 = vadd.f32 %v1657, %v1702
        %1704 = vdwg.mxu0
        %1705 = vmatpush.bf16.msra.mxu0 0
        %1706 = vmatpush.bf16.msra.mxu0 0
        %1707 = vmatpush.bf16.msra.mxu0 0
        %1708 = vmatpush.bf16.msra.mxu0 0
        %1709 = vmatpush.bf16.msra.mxu0 0
        %1710 = vmatpush.bf16.msra.mxu0 0
        %1711 = vmatpush.bf16.msra.mxu0 0
        %1712 = vmatpush.bf16.msra.mxu0 %v1685
        %1713 = vmatmul.bf16.gmra.mxu0 %v1689
        %v1714 = vpop.f32.mrf.mxu0
        %v1715 = vadd.f32 %v1669, %v1714
        %v1716 = vpop.f32.mrf.mxu0
        %v1717 = vadd.f32 %v1671, %v1716
        %1718 = vdwg.mxu0
        %v1719 = vmul.f32 %v1606, %v815
        %v1720 = vmul.f32 %v1607, %v813
        %v1721 = vmul.f32 %v1608, %v815
        %v1722 = vmul.f32 %v1609, %v813
        %s1723 = scalar_lea.vmem %s11, 16
        %v1724 = vld [vmem:[%s1723] sm:$0xf]
        %v1725 = vld [vmem:[%s1723 + $0x4] sm:$0xf]
        %v1726 = vpack.c.bf16 %v1721, %v1719
        %v1727 = vpack.c.bf16 %v1722, %v1720
        %v1730 = vunpack.c.l.b16 %v1724
        %v1731 = vunpack.c.l.b16 %v1725
        %v1732 = vpack.c.b16 %v1731, %v1730
        %1735 = vrot.lane.b32.xlu0 %v1726, 15
        %v1736 = vpop.permute.xlu0 %1735
        %1737 = vrot.lane.b32.xlu0 %v1727, 15
        %v1738 = vpop.permute.xlu0 %1737
        %v1739 = vsel %vm842, %v837, %v1736
        %v1740 = vsel %vm842, %v1736, %v1738
        %v1744 = vsel %vm1189, %v1732, 0
        %1746 = vmatpush.bf16.msra.mxu0 0
        %1747 = vmatpush.bf16.msra.mxu0 0
        %1748 = vmatpush.bf16.msra.mxu0 0
        %1749 = vmatpush.bf16.msra.mxu0 0
        %1750 = vmatpush.bf16.msra.mxu0 0
        %1751 = vmatpush.bf16.msra.mxu0 0
        %1752 = vmatpush.bf16.msra.mxu0 0
        %1753 = vmatpush.bf16.msra.mxu0 %v1739
        %1754 = vmatmul.bf16.gmra.mxu0 %v1744
        %v1755 = vpop.f32.mrf.mxu0
        %v1756 = vadd.f32 0.0, %v1755
        %v1757 = vpop.f32.mrf.mxu0
        %v1758 = vadd.f32 0.0, %v1757
        %1759 = vdwg.mxu0
        %1760 = vmatpush.bf16.msra.mxu0 0
        %1761 = vmatpush.bf16.msra.mxu0 0
        %1762 = vmatpush.bf16.msra.mxu0 0
        %1763 = vmatpush.bf16.msra.mxu0 0
        %1764 = vmatpush.bf16.msra.mxu0 0
        %1765 = vmatpush.bf16.msra.mxu0 0
        %1766 = vmatpush.bf16.msra.mxu0 0
        %1767 = vmatpush.bf16.msra.mxu0 %v1740
        %1768 = vmatmul.bf16.gmra.mxu0 %v1744
        %v1769 = vpop.f32.mrf.mxu0
        %v1770 = vadd.f32 0.0, %v1769
        %v1771 = vpop.f32.mrf.mxu0
        %v1772 = vadd.f32 0.0, %v1771
        %1773 = vdwg.mxu0
        %v1774 = vadd.f32 %v1701, %v1756
        %v1775 = vadd.f32 %v1715, %v1770
        %v1776 = vadd.f32 %v1703, %v1758
        %v1777 = vadd.f32 %v1717, %v1772
        %v1778 = vmul.f32 %v1606, %v896
        %v1779 = vmul.f32 %v1607, %v894
        %v1780 = vmul.f32 %v1608, %v896
        %v1781 = vmul.f32 %v1609, %v894
        %s1782 = scalar_lea.vmem %s11, 24
        %v1783 = vld [vmem:[%s1782] sm:$0xf]
        %v1784 = vld [vmem:[%s1782 + $0x4] sm:$0xf]
        %v1785 = vpack.c.bf16 %v1780, %v1778
        %v1786 = vpack.c.bf16 %v1781, %v1779
        %v1789 = vunpack.c.l.b16 %v1783
        %v1790 = vunpack.c.l.b16 %v1784
        %v1791 = vpack.c.b16 %v1790, %v1789
        %1794 = vrot.lane.b32.xlu0 %v1785, 1
        %v1795 = vpop.permute.xlu0 %1794
        %1796 = vrot.lane.b32.xlu0 %v1786, 1
        %v1797 = vpop.permute.xlu0 %1796
        %v1798 = vsel %vm923, %v918, %v1795
        %v1799 = vsel %vm923, %v1795, %v1797
        %v1803 = vsel %vm1189, %v1791, 0
        %1805 = vmatpush.bf16.msra.mxu0 0
        %1806 = vmatpush.bf16.msra.mxu0 0
        %1807 = vmatpush.bf16.msra.mxu0 0
        %1808 = vmatpush.bf16.msra.mxu0 0
        %1809 = vmatpush.bf16.msra.mxu0 0
        %1810 = vmatpush.bf16.msra.mxu0 0
        %1811 = vmatpush.bf16.msra.mxu0 0
        %1812 = vmatpush.bf16.msra.mxu0 %v1798
        %1813 = vmatmul.bf16.gmra.mxu0 %v1803
        %v1814 = vpop.f32.mrf.mxu0
        %v1815 = vadd.f32 0.0, %v1814
        %v1816 = vpop.f32.mrf.mxu0
        %v1817 = vadd.f32 0.0, %v1816
        %1818 = vdwg.mxu0
        %1819 = vmatpush.bf16.msra.mxu0 0
        %1820 = vmatpush.bf16.msra.mxu0 0
        %1821 = vmatpush.bf16.msra.mxu0 0
        %1822 = vmatpush.bf16.msra.mxu0 0
        %1823 = vmatpush.bf16.msra.mxu0 0
        %1824 = vmatpush.bf16.msra.mxu0 0
        %1825 = vmatpush.bf16.msra.mxu0 0
        %1826 = vmatpush.bf16.msra.mxu0 %v1799
        %1827 = vmatmul.bf16.gmra.mxu0 %v1803
        %v1828 = vpop.f32.mrf.mxu0
        %v1829 = vadd.f32 0.0, %v1828
        %v1830 = vpop.f32.mrf.mxu0
        %v1831 = vadd.f32 0.0, %v1830
        %1832 = vdwg.mxu0
        %v1833 = vadd.f32 %v1774, %v1815
        %v1834 = vadd.f32 %v1775, %v1829
        %v1835 = vadd.f32 %v1776, %v1817
        %v1836 = vadd.f32 %v1777, %v1831
        %s1837 = scalar_lea.vmem %s11, 32
        %v1838 = vld [vmem:[%s1837] sm:$0xf]
        %v1839 = vld [vmem:[%s1837 + $0x4] sm:$0xf]
        %v1840 = vpack.c.bf16 %v1608, %v1606
        %v1841 = vpack.c.bf16 %v1609, %v1607
        %v1844 = vunpack.c.l.b16 %v1838
        %v1845 = vunpack.c.l.b16 %v1839
        %v1846 = vpack.c.b16 %v1845, %v1844
        %v1848 = vsel %vm1189, %v1846, 0
        %1850 = vmatpush.bf16.msra.mxu0 0
        %1851 = vmatpush.bf16.msra.mxu0 0
        %1852 = vmatpush.bf16.msra.mxu0 0
        %1853 = vmatpush.bf16.msra.mxu0 0
        %1854 = vmatpush.bf16.msra.mxu0 0
        %1855 = vmatpush.bf16.msra.mxu0 0
        %1856 = vmatpush.bf16.msra.mxu0 0
        %1857 = vmatpush.bf16.msra.mxu0 %v1840
        %1858 = vmatmul.bf16.gmra.mxu0 %v1848
        %v1859 = vpop.f32.mrf.mxu0
        %v1860 = vadd.f32 0.0, %v1859
        %v1861 = vpop.f32.mrf.mxu0
        %v1862 = vadd.f32 0.0, %v1861
        %1863 = vdwg.mxu0
        %1864 = vmatpush.bf16.msra.mxu0 0
        %1865 = vmatpush.bf16.msra.mxu0 0
        %1866 = vmatpush.bf16.msra.mxu0 0
        %1867 = vmatpush.bf16.msra.mxu0 0
        %1868 = vmatpush.bf16.msra.mxu0 0
        %1869 = vmatpush.bf16.msra.mxu0 0
        %1870 = vmatpush.bf16.msra.mxu0 0
        %1871 = vmatpush.bf16.msra.mxu0 %v1841
        %1872 = vmatmul.bf16.gmra.mxu0 %v1848
        %v1873 = vpop.f32.mrf.mxu0
        %v1874 = vadd.f32 0.0, %v1873
        %v1875 = vpop.f32.mrf.mxu0
        %v1876 = vadd.f32 0.0, %v1875
        %1877 = vdwg.mxu0
        %v1878 = vadd.f32 %v1833, %v1860
        %v1879 = vadd.f32 %v1834, %v1874
        %v1880 = vadd.f32 %v1835, %v1862
        %v1881 = vadd.f32 %v1836, %v1876
        %v1882 = vmul.f32 %v1606, %v1024
        %v1883 = vmul.f32 %v1607, %v1028
        %v1884 = vmul.f32 %v1608, %v1024
        %v1885 = vmul.f32 %v1609, %v1028
        %s1886 = scalar_lea.vmem %s11, 40
        %v1887 = vld [vmem:[%s1886] sm:$0xf]
        %v1888 = vld [vmem:[%s1886 + $0x4] sm:$0xf]
        %v1889 = vpack.c.bf16 %v1884, %v1882
        %v1890 = vpack.c.bf16 %v1885, %v1883
        %v1893 = vunpack.c.l.b16 %v1887
        %v1894 = vunpack.c.l.b16 %v1888
        %v1895 = vpack.c.b16 %v1894, %v1893
        %1898 = vrot.lane.b32.xlu0 %v1889, 127
        %v1899 = vpop.permute.xlu0 %1898
        %1900 = vrot.lane.b32.xlu0 %v1890, 127
        %v1901 = vpop.permute.xlu0 %1900
        %v1902 = vsel %vm1055, %v1899, %v1901
        %v1903 = vsel %vm1055, %v1901, %v1054
        %v1907 = vsel %vm1189, %v1895, 0
        %1909 = vmatpush.bf16.msra.mxu0 0
        %1910 = vmatpush.bf16.msra.mxu0 0
        %1911 = vmatpush.bf16.msra.mxu0 0
        %1912 = vmatpush.bf16.msra.mxu0 0
        %1913 = vmatpush.bf16.msra.mxu0 0
        %1914 = vmatpush.bf16.msra.mxu0 0
        %1915 = vmatpush.bf16.msra.mxu0 0
        %1916 = vmatpush.bf16.msra.mxu0 %v1902
        %1917 = vmatmul.bf16.gmra.mxu0 %v1907
        %v1918 = vpop.f32.mrf.mxu0
        %v1919 = vadd.f32 0.0, %v1918
        %v1920 = vpop.f32.mrf.mxu0
        %v1921 = vadd.f32 0.0, %v1920
        %1922 = vdwg.mxu0
        %1923 = vmatpush.bf16.msra.mxu0 0
        %1924 = vmatpush.bf16.msra.mxu0 0
        %1925 = vmatpush.bf16.msra.mxu0 0
        %1926 = vmatpush.bf16.msra.mxu0 0
        %1927 = vmatpush.bf16.msra.mxu0 0
        %1928 = vmatpush.bf16.msra.mxu0 0
        %1929 = vmatpush.bf16.msra.mxu0 0
        %1930 = vmatpush.bf16.msra.mxu0 %v1903
        %1931 = vmatmul.bf16.gmra.mxu0 %v1907
        %v1932 = vpop.f32.mrf.mxu0
        %v1933 = vadd.f32 0.0, %v1932
        %v1934 = vpop.f32.mrf.mxu0
        %v1935 = vadd.f32 0.0, %v1934
        %1936 = vdwg.mxu0
        %v1937 = vadd.f32 %v1878, %v1919
        %v1938 = vadd.f32 %v1879, %v1933
        %v1939 = vadd.f32 %v1880, %v1921
        %v1940 = vadd.f32 %v1881, %v1935
        %v1941 = vmul.f32 %v1606, %v1105
        %v1942 = vmul.f32 %v1607, %v1109
        %v1943 = vmul.f32 %v1608, %v1105
        %v1944 = vmul.f32 %v1609, %v1109
        %s1945 = scalar_lea.vmem %s11, 48
        %v1946 = vld [vmem:[%s1945] sm:$0xf]
        %v1947 = vld [vmem:[%s1945 + $0x4] sm:$0xf]
        %v1948 = vpack.c.bf16 %v1943, %v1941
        %v1949 = vpack.c.bf16 %v1944, %v1942
        %v1952 = vunpack.c.l.b16 %v1946
        %v1953 = vunpack.c.l.b16 %v1947
        %v1954 = vpack.c.b16 %v1953, %v1952
        %1957 = vrot.lane.b32.xlu0 %v1948, 113
        %v1958 = vpop.permute.xlu0 %1957
        %1959 = vrot.lane.b32.xlu0 %v1949, 113
        %v1960 = vpop.permute.xlu0 %1959
        %v1961 = vsel %vm1136, %v1958, %v1960
        %v1962 = vsel %vm1136, %v1960, %v1135
        %v1966 = vsel %vm1189, %v1954, 0
        %1968 = vmatpush.bf16.msra.mxu0 0
        %1969 = vmatpush.bf16.msra.mxu0 0
        %1970 = vmatpush.bf16.msra.mxu0 0
        %1971 = vmatpush.bf16.msra.mxu0 0
        %1972 = vmatpush.bf16.msra.mxu0 0
        %1973 = vmatpush.bf16.msra.mxu0 0
        %1974 = vmatpush.bf16.msra.mxu0 0
        %1975 = vmatpush.bf16.msra.mxu0 %v1961
        %1976 = vmatmul.bf16.gmra.mxu0 %v1966
        %v1977 = vpop.f32.mrf.mxu0
        %v1978 = vadd.f32 0.0, %v1977
        %v1979 = vpop.f32.mrf.mxu0
        %v1980 = vadd.f32 0.0, %v1979
        %1981 = vdwg.mxu0
        %1982 = vmatpush.bf16.msra.mxu0 0
        %1983 = vmatpush.bf16.msra.mxu0 0
        %1984 = vmatpush.bf16.msra.mxu0 0
        %1985 = vmatpush.bf16.msra.mxu0 0
        %1986 = vmatpush.bf16.msra.mxu0 0
        %1987 = vmatpush.bf16.msra.mxu0 0
        %1988 = vmatpush.bf16.msra.mxu0 0
        %1989 = vmatpush.bf16.msra.mxu0 %v1962
        %1990 = vmatmul.bf16.gmra.mxu0 %v1966
        %v1991 = vpop.f32.mrf.mxu0
        %v1992 = vadd.f32 0.0, %v1991
        %v1993 = vpop.f32.mrf.mxu0
        %v1994 = vadd.f32 0.0, %v1993
        %1995 = vdwg.mxu0
        %v1996 = vadd.f32 %v1937, %v1978
        %v1997 = vadd.f32 %v1938, %v1992
        %v1998 = vadd.f32 %v1939, %v1980
        %v1999 = vadd.f32 %v1940, %v1994
        %v2000 = vmul.f32 %v1606, %v1186
        %v2001 = vmul.f32 %v1607, %v1190
        %v2002 = vmul.f32 %v1608, %v1186
        %v2003 = vmul.f32 %v1609, %v1190
        %s2004 = scalar_lea.vmem %s11, 56
        %v2005 = vld [vmem:[%s2004] sm:$0xf]
        %v2006 = vld [vmem:[%s2004 + $0x4] sm:$0xf]
        %v2007 = vpack.c.bf16 %v2002, %v2000
        %v2008 = vpack.c.bf16 %v2003, %v2001
        %v2011 = vunpack.c.l.b16 %v2005
        %v2012 = vunpack.c.l.b16 %v2006
        %v2013 = vpack.c.b16 %v2012, %v2011
        %2016 = vrot.lane.b32.xlu0 %v2007, 112
        %v2017 = vpop.permute.xlu0 %2016
        %2018 = vrot.lane.b32.xlu0 %v2008, 112
        %v2019 = vpop.permute.xlu0 %2018
        %v2020 = vsel %vm1217, %v2017, %v2019
        %v2021 = vsel %vm1217, %v2019, %v1216
        %v2025 = vsel %vm1189, %v2013, 0
        %2027 = vmatpush.bf16.msra.mxu0 0
        %2028 = vmatpush.bf16.msra.mxu0 0
        %2029 = vmatpush.bf16.msra.mxu0 0
        %2030 = vmatpush.bf16.msra.mxu0 0
        %2031 = vmatpush.bf16.msra.mxu0 0
        %2032 = vmatpush.bf16.msra.mxu0 0
        %2033 = vmatpush.bf16.msra.mxu0 0
        %2034 = vmatpush.bf16.msra.mxu0 %v2020
        %2035 = vmatmul.bf16.gmra.mxu0 %v2025
        %v2036 = vpop.f32.mrf.mxu0
        %v2037 = vadd.f32 0.0, %v2036
        %v2038 = vpop.f32.mrf.mxu0
        %v2039 = vadd.f32 0.0, %v2038
        %2040 = vdwg.mxu0
        %2041 = vmatpush.bf16.msra.mxu0 0
        %2042 = vmatpush.bf16.msra.mxu0 0
        %2043 = vmatpush.bf16.msra.mxu0 0
        %2044 = vmatpush.bf16.msra.mxu0 0
        %2045 = vmatpush.bf16.msra.mxu0 0
        %2046 = vmatpush.bf16.msra.mxu0 0
        %2047 = vmatpush.bf16.msra.mxu0 0
        %2048 = vmatpush.bf16.msra.mxu0 %v2021
        %2049 = vmatmul.bf16.gmra.mxu0 %v2025
        %v2050 = vpop.f32.mrf.mxu0
        %v2051 = vadd.f32 0.0, %v2050
        %v2052 = vpop.f32.mrf.mxu0
        %v2053 = vadd.f32 0.0, %v2052
        %2054 = vdwg.mxu0
        %v2055 = vadd.f32 %v1996, %v2037
        %v2056 = vadd.f32 %v1997, %v2051
        %v2057 = vadd.f32 %v1998, %v2039
        %v2058 = vadd.f32 %v1999, %v2053
        %v2059 = vmul.f32 %v1606, %v1267
        %v2060 = vmul.f32 %v1607, %v1271
        %v2061 = vmul.f32 %v1608, %v1267
        %v2062 = vmul.f32 %v1609, %v1271
        %s2063 = scalar_lea.vmem %s11, 64
        %v2064 = vld [vmem:[%s2063] sm:$0xf]
        %v2065 = vld [vmem:[%s2063 + $0x4] sm:$0xf]
        %v2066 = vpack.c.bf16 %v2061, %v2059
        %v2067 = vpack.c.bf16 %v2062, %v2060
        %v2070 = vunpack.c.l.b16 %v2064
        %v2071 = vunpack.c.l.b16 %v2065
        %v2072 = vpack.c.b16 %v2071, %v2070
        %2075 = vrot.lane.b32.xlu0 %v2066, 111
        %v2076 = vpop.permute.xlu0 %2075
        %2077 = vrot.lane.b32.xlu0 %v2067, 111
        %v2078 = vpop.permute.xlu0 %2077
        %v2079 = vsel %vm1298, %v2076, %v2078
        %v2080 = vsel %vm1298, %v2078, %v1297
        %v2084 = vsel %vm1189, %v2072, 0
        %2086 = vmatpush.bf16.msra.mxu0 0
        %2087 = vmatpush.bf16.msra.mxu0 0
        %2088 = vmatpush.bf16.msra.mxu0 0
        %2089 = vmatpush.bf16.msra.mxu0 0
        %2090 = vmatpush.bf16.msra.mxu0 0
        %2091 = vmatpush.bf16.msra.mxu0 0
        %2092 = vmatpush.bf16.msra.mxu0 0
        %2093 = vmatpush.bf16.msra.mxu0 %v2079
        %2094 = vmatmul.bf16.gmra.mxu0 %v2084
        %v2095 = vpop.f32.mrf.mxu0
        %v2096 = vadd.f32 0.0, %v2095
        %v2097 = vpop.f32.mrf.mxu0
        %v2098 = vadd.f32 0.0, %v2097
        %2099 = vdwg.mxu0
        %2100 = vmatpush.bf16.msra.mxu0 0
        %2101 = vmatpush.bf16.msra.mxu0 0
        %2102 = vmatpush.bf16.msra.mxu0 0
        %2103 = vmatpush.bf16.msra.mxu0 0
        %2104 = vmatpush.bf16.msra.mxu0 0
        %2105 = vmatpush.bf16.msra.mxu0 0
        %2106 = vmatpush.bf16.msra.mxu0 0
        %2107 = vmatpush.bf16.msra.mxu0 %v2080
        %2108 = vmatmul.bf16.gmra.mxu0 %v2084
        %v2109 = vpop.f32.mrf.mxu0
        %v2110 = vadd.f32 0.0, %v2109
        %v2111 = vpop.f32.mrf.mxu0
        %v2112 = vadd.f32 0.0, %v2111
        %2113 = vdwg.mxu0
        %v2114 = vadd.f32 %v2055, %v2096
        %v2115 = vadd.f32 %v2056, %v2110
        %v2116 = vadd.f32 %v2057, %v2098
        %v2117 = vadd.f32 %v2058, %v2112
        %v2118 = vld [vmem:[%s12] sm:$0xff]
        %v2119 = vld [vmem:[%s12 + $0x8] sm:$0xff]
        %2121 = vset.pattern.permute.xlu0 0
        %2122 = vperm.xlu0 %2121, %v2118
        %v2123 = vpop.permute.xlu0 %2122
        %2126 = vset.pattern.permute.xlu0 0
        %2127 = vperm.xlu0 %2126, %v2119
        %v2128 = vpop.permute.xlu0 %2127
        %v2130 = vadd.f32 %v2114, %v2123
        %v2131 = vadd.f32 %v2115, %v2123
        %v2132 = vadd.f32 %v2116, %v2128
        %v2133 = vadd.f32 %v2117, %v2128
        %v2134 = vld [vmem:[%s13] sm:$0xf]
        %v2135 = vld [vmem:[%s13 + $0x4] sm:$0xf]
        %v2136 = vpack.c.bf16 %v514, %v514
        %v2137 = vpack.c.bf16 %v515, %v515
        %v2138 = vld [vmem:[%s14] sm:$0xff]
        %v2139 = vld [vmem:[%s14 + $0x8] sm:$0xff]
        %2141 = vset.pattern.permute.xlu0 0
        %2142 = vperm.xlu0 %2141, %v2138
        %v2143 = vpop.permute.xlu0 %2142
        %2146 = vset.pattern.permute.xlu0 0
        %2147 = vperm.xlu0 %2146, %v2139
        %v2148 = vpop.permute.xlu0 %2147
        %v2152 = vunpack.c.l.b16 %v2134
        %v2153 = vunpack.c.l.b16 %v2135
        %v2154 = vpack.c.b16 %v2153, %v2152
        %v2156 = vsel %vm522, %v2154, 0
        %v2159 = vsel %vm716, %v2136, 0
        %v2162 = vsel %vm716, %v2137, 0
        %2164 = vmatpush.bf16.msra.mxu0 0
        %2165 = vmatpush.bf16.msra.mxu0 0
        %2166 = vmatpush.bf16.msra.mxu0 0
        %2167 = vmatpush.bf16.msra.mxu0 0
        %2168 = vmatpush.bf16.msra.mxu0 0
        %2169 = vmatpush.bf16.msra.mxu0 0
        %2170 = vmatpush.bf16.msra.mxu0 0
        %2171 = vmatpush.bf16.msra.mxu0 %v2159
        %2172 = vmatmul.bf16.gmra.mxu0 %v2156
        %v2173 = vpop.f32.mrf.mxu0
        %v2174 = vadd.f32 %v2143, %v2173
        %v2175 = vpop.f32.mrf.mxu0
        %v2176 = vadd.f32 %v2148, %v2175
        %2177 = vdwg.mxu0
        %2178 = vmatpush.bf16.msra.mxu0 0
        %2179 = vmatpush.bf16.msra.mxu0 0
        %2180 = vmatpush.bf16.msra.mxu0 0
        %2181 = vmatpush.bf16.msra.mxu0 0
        %2182 = vmatpush.bf16.msra.mxu0 0
        %2183 = vmatpush.bf16.msra.mxu0 0
        %2184 = vmatpush.bf16.msra.mxu0 0
        %2185 = vmatpush.bf16.msra.mxu0 %v2162
        %2186 = vmatmul.bf16.gmra.mxu0 %v2156
        %v2187 = vpop.f32.mrf.mxu0
        %v2188 = vadd.f32 %v2143, %v2187
        %v2189 = vpop.f32.mrf.mxu0
        %v2190 = vadd.f32 %v2148, %v2189
        %2191 = vdwg.mxu0
        %v2192 = vadd.f32 %v2174, %v2130
        %v2193 = vadd.f32 %v2188, %v2131
        %v2194 = vadd.f32 %v2176, %v2132
        %v2195 = vadd.f32 %v2190, %v2133
        %2196 = vst [vmem:[%s502] sm:$0xff] %v2192
        %2197 = vst [vmem:[%s502 + $0x8] sm:$0xff] %v2193
        %2198 = vst [vmem:[%s502 + $0x10] sm:$0xff] %v2194
        %2199 = vst [vmem:[%s502 + $0x18] sm:$0xff] %v2195
        %s2200 = sand.u32 %s362, 1
        %s2201 = scalar_lea.sflag [#allocation3], %s2200
        %s2202 = sand.u32 %s362, 1
        %s2203 = smul.addr %s2202, 32
        %s2204 = scalar_lea.vmem [#allocation2], %s2203
        // Predicated region
        $region81: #{tpu_custom_call.1} parent=79 // pred_check
          %p2205 = pneg %p372
        $region82: #{tpu_custom_call.1} parent=79 // pred_check_branch
          %2207 = sbr.rel (%p2205) target = $region84
        $region83: #{tpu_custom_call.1} parent=79 // pred_region
          %2209 = vsyncadd %s2201, 0
          %s2210 = smul.addr %s29, 4
          %s2211 = smul.addr %s2210, 8
          %s2212 = scalar_lea.hbm %s15, %s2211
          %s2213 = sshll.u32 %s2204, 4
          %s2214 = int_to_ptr.vmem [resolvable:$true] %s2213
          %s2215 = sshll.u32 %s2212, 4
          %s2216 = int_to_ptr.hbm [resolvable:$true] %s2215
          %2221 = dma.vmem_to_hbm [thread:$0]  %s2214, 512, %s2216, %s2201, 256, 256, 16
        $region84: #{tpu_custom_call.1} parent=79 // pred_fallthru
          _
      $region80: #{tpu_custom_call.1} parent=5 // pred_fallthru
        _
      %p2222 = scmp.le.s32.totalorder 2, %s24
      // Predicated region
      $region85: #{tpu_custom_call.1} parent=5 // pred_check
        %p2223 = pneg %p2222
      $region86: #{tpu_custom_call.1} parent=5 // pred_check_branch
        %2225 = sbr.rel (%p2223) target = $region88
      $region87: #{tpu_custom_call.1} parent=5 // pred_region
        %s2226 = ssub.s32 %s24, 2
        // Predicated region
        $region89: #{tpu_custom_call.1} parent=87 // pred_check
          %p2227 = pneg %p378
        $region90: #{tpu_custom_call.1} parent=87 // pred_check_branch
          %2229 = sbr.rel (%p2227) target = $region92
        $region91: #{tpu_custom_call.1} parent=87 // pred_region
          %s2230 = sand.u32 %s363, 1
          %s2231 = scalar_lea.sflag [#allocation3], %s2230
          %s2232 = sand.u32 %s363, 1
          %s2233 = smul.addr %s2232, 32
          %s2234 = scalar_lea.vmem [#allocation2], %s2233
          %2236 = dma.done %s2231, 512
        $region92: #{tpu_custom_call.1} parent=87 // pred_fallthru
          _
      $region88: #{tpu_custom_call.1} parent=5 // pred_fallthru
        _
    $region6: #{tpu_custom_call.1} parent=1 // loop_footer
      %s28 = sadd.s32 1, %s24
    $region7: #{tpu_custom_call.1} parent=1 // loop_footer_branch
      %23 = sbr.rel target = $region3
    $region8: #{tpu_custom_call.1} parent=1 // loop_exit
      _
    %2237 = vsyncpa [#allocation3], 1
    %s2238 = scalar_lea.sflag [#allocation3], 1
    %2239 = vsyncpa %s2238, 1

</llo_original>
